<compile_context>
chip_gen: v5e
topology: v5e:2x2
jax: 0.10.0
libtpu: 0.0.40
codegen_flags: <defaults>
</compile_context>

<pallas_src>
import functools

import jax
import jax.numpy as jnp
from jax import lax
from jax.experimental import pallas as pl
from jax.experimental.pallas import tpu as pltpu


def _round_up(x, m):
    return (x + m - 1) // m * m


def _vmem_capacity_bytes():
    try:
        return int(pltpu.get_tpu_info().vmem_capacity_bytes)
    except Exception:
        return 64 << 20  # conservative (v7x-sized) fallback


def _resident_spec(shape):
    """Constant-index_map (VMEM-resident) operand; single-buffered when supported."""
    index_map = lambda i: (0,) * len(shape)
    try:
        return pl.BlockSpec(shape, index_map, pipeline_mode=pl.Buffered(1))
    except (TypeError, AttributeError):
        return pl.BlockSpec(shape, index_map)


def discriminator_kernel(x_ref, w1_ref, b1_ref, w2_ref, b2_ref,
                         w3_ref, b3_ref, o_ref):
    # x_ref: (tm, in_dim_p) f32 batch tile.  Cast to bf16 in-kernel (VPU has
    # slack); HBM only ever sees one 4 B/elem read of x.
    x = x_ref[...].astype(jnp.bfloat16)

    # Layer 1: bf16 MXU matmul, f32 accumulation; activation math in f32.
    h1 = jnp.dot(x, w1_ref[...], preferred_element_type=jnp.float32) + b1_ref[...]
    h1 = jnp.maximum(h1, 0.2 * h1)               # LeakyReLU(0.2), no select

    # Layer 2.
    h2 = jnp.dot(h1.astype(jnp.bfloat16), w2_ref[...],
                 preferred_element_type=jnp.float32) + b2_ref[...]
    h2 = jnp.maximum(h2, 0.2 * h2)

    # Layer 3 (256 -> 1): contract the feature axis of the (1, 256) weight row
    # against the feature axis of h2 so the result is a lane-dense (1, tm)
    # row (no (tm, 1) masked-store layout anywhere).
    h3 = lax.dot_general(
        w3_ref[...], h2,
        dimension_numbers=(((1,), (1,)), ((), ())),
        preferred_element_type=jnp.float32)       # (1, tm)
    h3 = h3 + b3_ref[...]

    # Sigmoid: exp on the EUP; exact divide keeps us tight to the reference.
    o_ref[0] = 1.0 / (1.0 + jnp.exp(-h3))


def _choose_tile(B, in_dim_p, block_b, vmem_cap):
    # VMEM-aware cap: leave room for the single-buffered weights, the f32
    # activations and compiler headroom; the rest goes to the 2x-buffered
    # f32 x tile.
    resident = in_dim_p * 512 * 2 + 512 * 256 * 2
    x_budget = max(4 << 20, vmem_cap - resident - (24 << 20))
    tm_vmem = max(16, (x_budget // (2 * in_dim_p * 4)) // 16 * 16)
    tm_cap = max(16, min(block_b, tm_vmem, _round_up(B, 16)))
    # Right-size tm so the last tile carries as few padded rows as possible.
    num_tiles = pl.cdiv(B, tm_cap)
    tm = _round_up(pl.cdiv(B, num_tiles), 16)
    num_tiles = pl.cdiv(B, tm)
    return tm, num_tiles


def _vmem_limit_bytes(tm, in_dim_p, vmem_cap):
    w_bytes = (in_dim_p * 512 + 512 * 256) * 2        # bf16, single-buffered
    b_bytes = (512 + 256 + 256 + 1) * 4               # f32 biases + w3 row
    x_bytes = 2 * tm * in_dim_p * 4                   # f32 x tile, 2 buffers
    o_bytes = 2 * tm * 4
    act_bytes = tm * (512 + 512 + 256 + 256) * 4      # f32 intermediates
    total = w_bytes + b_bytes + x_bytes + o_bytes + act_bytes + (4 << 20)
    return int(min(max(total, 16 << 20), vmem_cap - (8 << 20)))


@functools.partial(jax.jit, static_argnames=("block_b",))
def discriminator_forward(img, params, *, block_b=512):
    """img: (B, C, H, W) float32. Returns (B, 1) float32 validity scores."""
    w1, b1, w2, b2, w3_row, b3 = params
    B = img.shape[0]
    in_dim = 1
    for d in img.shape[1:]:
        in_dim *= d
    in_dim_p = w1.shape[0]                  # lane-aligned (padded) input dim

    vmem_cap = _vmem_capacity_bytes()
    tm, num_tiles = _choose_tile(B, in_dim_p, block_b, vmem_cap)
    b_pad = num_tiles * tm

    # Same semantics as torch .view(B, -1).  Kept in f32 (the kernel does the
    # bf16 cast on-chip).  The pad only materializes when B / in_dim need it.
    x_flat = img.reshape(B, in_dim)
    if b_pad != B or in_dim_p != in_dim:
        x_flat = jnp.pad(x_flat, ((0, b_pad - B), (0, in_dim_p - in_dim)))

    grid_spec = pltpu.PrefetchScalarGridSpec(
        num_scalar_prefetch=0,
        grid=(num_tiles,),
        in_specs=[
            pl.BlockSpec((tm, in_dim_p), lambda i: (i, 0)),   # streamed f32 x
            _resident_spec(w1.shape), _resident_spec(b1.shape),
            _resident_spec(w2.shape), _resident_spec(b2.shape),
            _resident_spec(w3_row.shape), _resident_spec(b3.shape),
        ],
        # Lane-dense (1, 1, tm) output rows; reshaped to (B, 1) by the caller.
        out_specs=pl.BlockSpec((1, 1, tm), lambda i: (i, 0, 0)),
    )

    out = pl.pallas_call(
        discriminator_kernel,
        out_shape=jax.ShapeDtypeStruct((num_tiles, 1, tm), jnp.float32),
        grid_spec=grid_spec,
        compiler_params=pltpu.CompilerParams(
            dimension_semantics=("parallel",),
            vmem_limit_bytes=_vmem_limit_bytes(tm, in_dim_p, vmem_cap)),
    )(x_flat, w1, b1, w2, b2, w3_row, b3)

    return out.reshape(b_pad, 1)[:B]


def init_params(key, in_dim):
    """torch.nn.Linear-style init (U[-1/sqrt(fan_in), +bound]).

    w1 is zero-padded along its input axis to a multiple of 128 (done once
    here, outside the kernel) so the layer-1 K dimension is lane aligned; the
    zero rows do not change the result.  Big weights are stored in bf16.
    """
    in_dim_p = _round_up(in_dim, 128)

    def linear(k, fan_in, fan_out):
        kw, kb = jax.random.split(k)
        bound = float(fan_in) ** -0.5
        w = jax.random.uniform(kw, (fan_in, fan_out), jnp.float32, -bound, bound)
        b = jax.random.uniform(kb, (1, fan_out), jnp.float32, -bound, bound)
        return w, b

    k1, k2, k3 = jax.random.split(key, 3)
    w1, b1 = linear(k1, in_dim, 512)
    if in_dim_p != in_dim:
        w1 = jnp.pad(w1, ((0, in_dim_p - in_dim), (0, 0)))
    w1 = w1.astype(jnp.bfloat16)
    w2, b2 = linear(k2, 512, 256)
    w2 = w2.astype(jnp.bfloat16)
    w3, b3 = linear(k3, 256, 1)
    w3_row = w3.T                      # (1, 256) f32 row, contracted in-kernel
    return (w1, b1, w2, b2, w3_row, b3)


def reference_forward(img, params):
    """Pure-JAX reference using the same mixed-precision recipe."""
    w1, b1, w2, b2, w3_row, b3 = params
    B = img.shape[0]
    x = img.reshape(B, -1)
    pad = w1.shape[0] - x.shape[1]
    if pad:
        x = jnp.pad(x, ((0, 0), (0, pad)))
    h1 = jnp.dot(x.astype(jnp.bfloat16), w1,
                 preferred_element_type=jnp.float32) + b1
    h1 = jnp.maximum(h1, 0.2 * h1)
    h2 = jnp.dot(h1.astype(jnp.bfloat16), w2,
                 preferred_element_type=jnp.float32) + b2
    h2 = jnp.maximum(h2, 0.2 * h2)
    h3 = jnp.dot(h2, w3_row.T) + b3
    return jax.nn.sigmoid(h3)


if __name__ == "__main__":
    # Small shapes consistent with the module: img_shape = (channels, img_size, img_size).
    B, C, H, W = 2, 4, 16, 16            # in_dim = 1024 (lane aligned)
    key = jax.random.PRNGKey(0)
    k_img, k_par = jax.random.split(key)

    img = jax.random.normal(k_img, (B, C, H, W), jnp.float32)
    params = init_params(k_par, C * H * W)

    validity = discriminator_forward(img, params)
    jax.block_until_ready(validity)

    ref = reference_forward(img, params)
    assert validity.shape == (B, 1)
    assert jnp.allclose(validity, ref, atol=2e-3, rtol=2e-3), (
        jnp.max(jnp.abs(validity - ref)))

    print("KERNEL_OK")
</pallas_src>

<mosaic_0001>
module attributes {stable_mosaic.version = 11 : i64} {
  func.func @discriminator_kernel(%arg0: i32, %arg1: memref<16x1024xf32, #tpu.memory_space<vmem>>, %arg2: memref<1024x512xbf16, #tpu.memory_space<vmem>>, %arg3: memref<1x512xf32, #tpu.memory_space<vmem>>, %arg4: memref<512x256xbf16, #tpu.memory_space<vmem>>, %arg5: memref<1x256xf32, #tpu.memory_space<vmem>>, %arg6: memref<1x256xf32, #tpu.memory_space<vmem>>, %arg7: memref<1x1xf32, #tpu.memory_space<vmem>>, %arg8: memref<1x1x16xf32, #tpu.memory_space<vmem>>) attributes {dimension_semantics = [#tpu.dimension_semantics<parallel>], iteration_bounds = array<i64: 1>, scalar_prefetch = 0 : i64, scratch_operands = 0 : i64, tpu.core_type = #tpu.core_type<tc>, window_params = [{transform_indices = @transform_0, window_bounds = array<i64: 16, 1024>}, {pipeline_mode = #tpu.pipeline_mode<synchronous>, transform_indices = @transform_1, window_bounds = array<i64: 1024, 512>}, {pipeline_mode = #tpu.pipeline_mode<synchronous>, transform_indices = @transform_2, window_bounds = array<i64: 1, 512>}, {pipeline_mode = #tpu.pipeline_mode<synchronous>, transform_indices = @transform_3, window_bounds = array<i64: 512, 256>}, {pipeline_mode = #tpu.pipeline_mode<synchronous>, transform_indices = @transform_4, window_bounds = array<i64: 1, 256>}, {pipeline_mode = #tpu.pipeline_mode<synchronous>, transform_indices = @transform_5, window_bounds = array<i64: 1, 256>}, {pipeline_mode = #tpu.pipeline_mode<synchronous>, transform_indices = @transform_6, window_bounds = array<i64: 1, 1>}, {transform_indices = @transform_7, window_bounds = array<i64: 1, 1, 16>}]} {
    %c0 = arith.constant 0 : index
    %c0_0 = arith.constant 0 : index
    %0 = vector.load %arg1[%c0, %c0_0] : memref<16x1024xf32, #tpu.memory_space<vmem>>, vector<16x1024xf32>
    %1 = arith.truncf %0 : vector<16x1024xf32> to vector<16x1024xbf16>
    %c0_1 = arith.constant 0 : index
    %c0_2 = arith.constant 0 : index
    %2 = vector.load %arg2[%c0_1, %c0_2] : memref<1024x512xbf16, #tpu.memory_space<vmem>>, vector<1024x512xbf16>
    %cst = arith.constant dense<0.000000e+00> : vector<16x512xf32>
    %3 = tpu.matmul %1, %2, %cst {dimension_numbers = #tpu.dot_dimension_numbers<[1], [0], [0], [1], [0, 0, 1, 1], [], []>} : vector<16x1024xbf16>, vector<1024x512xbf16>, vector<16x512xf32> -> vector<16x512xf32>
    %c0_3 = arith.constant 0 : index
    %c0_4 = arith.constant 0 : index
    %4 = vector.load %arg3[%c0_3, %c0_4] : memref<1x512xf32, #tpu.memory_space<vmem>>, vector<1x512xf32>
    %5 = vector.broadcast %4 : vector<1x512xf32> to vector<16x512xf32>
    %6 = arith.addf %3, %5 : vector<16x512xf32>
    %cst_5 = arith.constant 2.000000e-01 : f32
    %7 = vector.broadcast %cst_5 : f32 to vector<16x512xf32>
    %8 = arith.mulf %7, %6 : vector<16x512xf32>
    %9 = arith.maximumf %6, %8 : vector<16x512xf32>
    %10 = arith.truncf %9 : vector<16x512xf32> to vector<16x512xbf16>
    %c0_6 = arith.constant 0 : index
    %c0_7 = arith.constant 0 : index
    %11 = vector.load %arg4[%c0_6, %c0_7] : memref<512x256xbf16, #tpu.memory_space<vmem>>, vector<512x256xbf16>
    %cst_8 = arith.constant dense<0.000000e+00> : vector<16x256xf32>
    %12 = tpu.matmul %10, %11, %cst_8 {dimension_numbers = #tpu.dot_dimension_numbers<[1], [0], [0], [1], [0, 0, 1, 1], [], []>} : vector<16x512xbf16>, vector<512x256xbf16>, vector<16x256xf32> -> vector<16x256xf32>
    %c0_9 = arith.constant 0 : index
    %c0_10 = arith.constant 0 : index
    %13 = vector.load %arg5[%c0_9, %c0_10] : memref<1x256xf32, #tpu.memory_space<vmem>>, vector<1x256xf32>
    %14 = vector.broadcast %13 : vector<1x256xf32> to vector<16x256xf32>
    %15 = arith.addf %12, %14 : vector<16x256xf32>
    %cst_11 = arith.constant 2.000000e-01 : f32
    %16 = vector.broadcast %cst_11 : f32 to vector<16x256xf32>
    %17 = arith.mulf %16, %15 : vector<16x256xf32>
    %18 = arith.maximumf %15, %17 : vector<16x256xf32>
    %c0_12 = arith.constant 0 : index
    %c0_13 = arith.constant 0 : index
    %19 = vector.load %arg6[%c0_12, %c0_13] : memref<1x256xf32, #tpu.memory_space<vmem>>, vector<1x256xf32>
    %cst_14 = arith.constant dense<0.000000e+00> : vector<1x16xf32>
    %20 = tpu.matmul %19, %18, %cst_14 {dimension_numbers = #tpu.dot_dimension_numbers<[1], [1], [0], [0], [0, 0, 1, 0], [], []>} : vector<1x256xf32>, vector<16x256xf32>, vector<1x16xf32> -> vector<1x16xf32>
    %c0_15 = arith.constant 0 : index
    %c0_16 = arith.constant 0 : index
    %21 = vector.load %arg7[%c0_15, %c0_16] : memref<1x1xf32, #tpu.memory_space<vmem>>, vector<1x1xf32>
    %22 = vector.broadcast %21 : vector<1x1xf32> to vector<1x16xf32>
    %23 = arith.addf %20, %22 : vector<1x16xf32>
    %cst_17 = arith.constant 0.000000e+00 : f32
    %24 = vector.broadcast %cst_17 : f32 to vector<1x16xf32>
    %25 = arith.subf %24, %23 : vector<1x16xf32>
    %26 = math.exp %25 : vector<1x16xf32>
    %cst_18 = arith.constant 1.000000e+00 : f32
    %27 = vector.broadcast %cst_18 : f32 to vector<1x16xf32>
    %28 = arith.addf %27, %26 : vector<1x16xf32>
    %cst_19 = arith.constant 1.000000e+00 : f32
    %29 = vector.broadcast %cst_19 : f32 to vector<1x16xf32>
    %30 = arith.divf %29, %28 : vector<1x16xf32>
    %c0_20 = arith.constant 0 : index
    %c0_21 = arith.constant 0 : index
    %c0_22 = arith.constant 0 : index
    %31 = vector.load %arg8[%c0_20, %c0_21, %c0_22] : memref<1x1x16xf32, #tpu.memory_space<vmem>>, vector<1x1x16xf32>
    %32 = vector.shape_cast %31 : vector<1x1x16xf32> to vector<1x16xf32>
    %33 = vector.shape_cast %30 : vector<1x16xf32> to vector<1x1x16xf32>
    tpu.vector_store %arg8[%c0_20, %c0_21, %c0_22], %33 {strides = array<i32>} : memref<1x1x16xf32, #tpu.memory_space<vmem>>, vector<1x1x16xf32>,
    return
  }
  func.func @transform_0(%arg0: i32) -> (i32, i32) {
    %c0_i32 = arith.constant 0 : i32
    %c0_i32_0 = arith.constant 0 : i32
    return %arg0, %c0_i32 : i32, i32
  }
  func.func @transform_1(%arg0: i32) -> (i32, i32) {
    %c0_i32 = arith.constant 0 : i32
    %c0_i32_0 = arith.constant 0 : i32
    %c0_i32_1 = arith.constant 0 : i32
    return %c0_i32, %c0_i32_0 : i32, i32
  }
  func.func @transform_2(%arg0: i32) -> (i32, i32) {
    %c0_i32 = arith.constant 0 : i32
    %c0_i32_0 = arith.constant 0 : i32
    %c0_i32_1 = arith.constant 0 : i32
    return %c0_i32, %c0_i32_0 : i32, i32
  }
  func.func @transform_3(%arg0: i32) -> (i32, i32) {
    %c0_i32 = arith.constant 0 : i32
    %c0_i32_0 = arith.constant 0 : i32
    %c0_i32_1 = arith.constant 0 : i32
    return %c0_i32, %c0_i32_0 : i32, i32
  }
  func.func @transform_4(%arg0: i32) -> (i32, i32) {
    %c0_i32 = arith.constant 0 : i32
    %c0_i32_0 = arith.constant 0 : i32
    %c0_i32_1 = arith.constant 0 : i32
    return %c0_i32, %c0_i32_0 : i32, i32
  }
  func.func @transform_5(%arg0: i32) -> (i32, i32) {
    %c0_i32 = arith.constant 0 : i32
    %c0_i32_0 = arith.constant 0 : i32
    %c0_i32_1 = arith.constant 0 : i32
    return %c0_i32, %c0_i32_0 : i32, i32
  }
  func.func @transform_6(%arg0: i32) -> (i32, i32) {
    %c0_i32 = arith.constant 0 : i32
    %c0_i32_0 = arith.constant 0 : i32
    %c0_i32_1 = arith.constant 0 : i32
    return %c0_i32, %c0_i32_0 : i32, i32
  }
  func.func @transform_7(%arg0: i32) -> (i32, i32, i32) {
    %c0_i32 = arith.constant 0 : i32
    %c0_i32_0 = arith.constant 0 : i32
    %c0_i32_1 = arith.constant 0 : i32
    return %arg0, %c0_i32, %c0_i32_0 : i32, i32, i32
  }
}

</mosaic_0001>

<llo_original>
// kernel: discriminator_forward.1
$region0: #{discriminator_forward.1}
  #allocation0 [shape = 'u32[]', space=smem, size = 0x4, offset = 0x4, fixed_abs, tag = 'smem constant byte address 0x4 - core index']
  #allocation1 [shape = 'u32[72,128]{1,0:T(1,128)}', space=vmem, size = 0x9000, scoped, tag = 'internal scratch']
  #allocation2 [shape = 'f32[1,1]{1,0:T(1,128)S(1)}', space=vmem, size = 0x200, scoped, tag = 'scoped memory for discriminator_forward.1']
  %s0 = inlined_call_operand.vmem [shape: f32[16,1024], index: 0, kind: input, shape index: {}]
  %s1 = inlined_call_operand.hbm [shape: bf16[1024,512], index: 1, kind: input, shape index: {}]
  %s2 = inlined_call_operand.vmem [shape: f32[1,512], index: 2, kind: input, shape index: {}]
  %s3 = inlined_call_operand.hbm [shape: bf16[512,256], index: 3, kind: input, shape index: {}]
  %s4 = inlined_call_operand.vmem [shape: f32[1,256], index: 4, kind: input, shape index: {}]
  %s5 = inlined_call_operand.vmem [shape: f32[1,256], index: 5, kind: input, shape index: {}]
  %s6 = inlined_call_operand.<no memory space> [shape: f32[1,1], index: 6, kind: input, shape index: {}]
  %s7 = inlined_call_operand.vmem [shape: f32[1,1,16], index: 7, kind: output, shape index: {}]
  %s8 = sld [smem:[#allocation0]]
  $region46: #{discriminator_forward.1} parent=0
    _
  %s10 = ssub.s32 1, %s8
  %s11 = scalar_select 0, %s10, %s8
  %v12 = vstv %s6
  %13 = vst [vmem:[#allocation2] sm:$0x1] %v12
  $region1: #{discriminator_forward.1} parent=0
    #allocation3 [shape = 'u8[1048576]{0}', space=vmem, size = 0x100000, scoped, tag = 'input window, operand 1, single buffered']
    #allocation4 [shape = 's32[1]{0}', space=sflag, size = 0x4, scoped, tag = 'scoped memory for discriminator_forward.1']
    #allocation5 [shape = 'u8[262144]{0}', space=vmem, size = 0x40000, scoped, tag = 'input window, operand 3, single buffered']
    #allocation6 [shape = 's32[1]{0}', space=sflag, size = 0x4, scoped, tag = 'scoped memory for discriminator_forward.1']
    %14 = vsyncpa [#allocation4], 0
    %15 = vsyncpa [#allocation6], 0
    // Predicated region
    $region2: #{discriminator_forward.1} parent=1 // pred_check
      _
    $region3: #{discriminator_forward.1} parent=1 // pred_check_branch
      %17 = sbr.rel (0) target = $region5
    $region4: #{discriminator_forward.1} parent=1 // pred_region
      _
    $region5: #{discriminator_forward.1} parent=1 // pred_fallthru
      _
    // Predicated region
    $region6: #{discriminator_forward.1} parent=1 // pred_check
      _
    $region7: #{discriminator_forward.1} parent=1 // pred_check_branch
      %19 = sbr.rel (0) target = $region9
    $region8: #{discriminator_forward.1} parent=1 // pred_region
      %21 = vsyncadd [#allocation4], 0
      %s22 = sshll.u32 %s1, 4
      %s23 = int_to_ptr.hbm [resolvable:$true] %s22
      %s24 = sshll.u32 [#allocation3], 4
      %s25 = int_to_ptr.vmem [resolvable:$true] %s24
      %30 = dma.hbm_to_vmem [thread:$0]  %s23, 32768, %s25, [#allocation4], 256, 256, 16
    $region9: #{discriminator_forward.1} parent=1 // pred_fallthru
      _
    // Predicated region
    $region10: #{discriminator_forward.1} parent=1 // pred_check
      _
    $region11: #{discriminator_forward.1} parent=1 // pred_check_branch
      %32 = sbr.rel (0) target = $region13
    $region12: #{discriminator_forward.1} parent=1 // pred_region
      _
    $region13: #{discriminator_forward.1} parent=1 // pred_fallthru
      _
    // Predicated region
    $region14: #{discriminator_forward.1} parent=1 // pred_check
      _
    $region15: #{discriminator_forward.1} parent=1 // pred_check_branch
      %34 = sbr.rel (0) target = $region17
    $region16: #{discriminator_forward.1} parent=1 // pred_region
      %36 = vsyncadd [#allocation6], 0
      %s37 = sshll.u32 %s3, 4
      %s38 = int_to_ptr.hbm [resolvable:$true] %s37
      %s39 = sshll.u32 [#allocation5], 4
      %s40 = int_to_ptr.vmem [resolvable:$true] %s39
      %45 = dma.hbm_to_vmem [thread:$0]  %s38, 8192, %s40, [#allocation6], 128, 128, 8
    $region17: #{discriminator_forward.1} parent=1 // pred_fallthru
      _
    // Predicated region
    $region18: #{discriminator_forward.1} parent=1 // pred_check
      _
    $region19: #{discriminator_forward.1} parent=1 // pred_check_branch
      %47 = sbr.rel (0) target = $region21
    $region20: #{discriminator_forward.1} parent=1 // pred_region
      _
    $region21: #{discriminator_forward.1} parent=1 // pred_fallthru
      _
    // Predicated region
    $region22: #{discriminator_forward.1} parent=1 // pred_check
      _
    $region23: #{discriminator_forward.1} parent=1 // pred_check_branch
      %49 = sbr.rel (0) target = $region25
    $region24: #{discriminator_forward.1} parent=1 // pred_region
      _
    $region25: #{discriminator_forward.1} parent=1 // pred_fallthru
      _
    // Predicated region
    $region26: #{discriminator_forward.1} parent=1 // pred_check
      _
    $region27: #{discriminator_forward.1} parent=1 // pred_check_branch
      %51 = sbr.rel (0) target = $region29
    $region28: #{discriminator_forward.1} parent=1 // pred_region
      _
    $region29: #{discriminator_forward.1} parent=1 // pred_fallthru
      _
    // Predicated region
    $region30: #{discriminator_forward.1} parent=1 // pred_check
      _
    $region31: #{discriminator_forward.1} parent=1 // pred_check_branch
      %53 = sbr.rel (0) target = $region33
    $region32: #{discriminator_forward.1} parent=1 // pred_region
      %55 = dma.done [#allocation4], 32768
    $region33: #{discriminator_forward.1} parent=1 // pred_fallthru
      _
    // Predicated region
    $region34: #{discriminator_forward.1} parent=1 // pred_check
      _
    $region35: #{discriminator_forward.1} parent=1 // pred_check_branch
      %57 = sbr.rel (0) target = $region37
    $region36: #{discriminator_forward.1} parent=1 // pred_region
      %59 = dma.done [#allocation6], 8192
    $region37: #{discriminator_forward.1} parent=1 // pred_fallthru
      _
    %v60 = vld [vmem:[%s0] sm:$0xff]
    %v61 = vld [vmem:[%s0 + $0x8] sm:$0xff]
    %v62 = vld [vmem:[%s0 + $0x10] sm:$0xff]
    %v63 = vld [vmem:[%s0 + $0x18] sm:$0xff]
    %v64 = vld [vmem:[%s0 + $0x20] sm:$0xff]
    %v65 = vld [vmem:[%s0 + $0x28] sm:$0xff]
    %v66 = vld [vmem:[%s0 + $0x30] sm:$0xff]
    %v67 = vld [vmem:[%s0 + $0x38] sm:$0xff]
    %v68 = vld [vmem:[%s0 + $0x40] sm:$0xff]
    %v69 = vld [vmem:[%s0 + $0x48] sm:$0xff]
    %v70 = vld [vmem:[%s0 + $0x50] sm:$0xff]
    %v71 = vld [vmem:[%s0 + $0x58] sm:$0xff]
    %v72 = vld [vmem:[%s0 + $0x60] sm:$0xff]
    %v73 = vld [vmem:[%s0 + $0x68] sm:$0xff]
    %v74 = vld [vmem:[%s0 + $0x70] sm:$0xff]
    %v75 = vld [vmem:[%s0 + $0x78] sm:$0xff]
    %v76 = vpack.c.bf16 %v68, %v60
    %v77 = vpack.c.bf16 %v69, %v61
    %v78 = vpack.c.bf16 %v70, %v62
    %v79 = vpack.c.bf16 %v71, %v63
    %v80 = vpack.c.bf16 %v72, %v64
    %v81 = vpack.c.bf16 %v73, %v65
    %v82 = vpack.c.bf16 %v74, %v66
    %v83 = vpack.c.bf16 %v75, %v67
    %v84 = vld [vmem:[#allocation3] sm:$0xff]
    %v85 = vld [vmem:[#allocation3 + $0x8] sm:$0xff]
    %v86 = vld [vmem:[#allocation3 + $0x10] sm:$0xff]
    %v87 = vld [vmem:[#allocation3 + $0x18] sm:$0xff]
    %v88 = vld [vmem:[#allocation3 + $0x20] sm:$0xff]
    %v89 = vld [vmem:[#allocation3 + $0x28] sm:$0xff]
    %v90 = vld [vmem:[#allocation3 + $0x30] sm:$0xff]
    %v91 = vld [vmem:[#allocation3 + $0x38] sm:$0xff]
    %v92 = vld [vmem:[#allocation3 + $0x40] sm:$0xff]
    %v93 = vld [vmem:[#allocation3 + $0x48] sm:$0xff]
    %v94 = vld [vmem:[#allocation3 + $0x50] sm:$0xff]
    %v95 = vld [vmem:[#allocation3 + $0x58] sm:$0xff]
    %v96 = vld [vmem:[#allocation3 + $0x60] sm:$0xff]
    %v97 = vld [vmem:[#allocation3 + $0x68] sm:$0xff]
    %v98 = vld [vmem:[#allocation3 + $0x70] sm:$0xff]
    %v99 = vld [vmem:[#allocation3 + $0x78] sm:$0xff]
    %v100 = vld [vmem:[#allocation3 + $0x80] sm:$0xff]
    %v101 = vld [vmem:[#allocation3 + $0x88] sm:$0xff]
    %v102 = vld [vmem:[#allocation3 + $0x90] sm:$0xff]
    %v103 = vld [vmem:[#allocation3 + $0x98] sm:$0xff]
    %v104 = vld [vmem:[#allocation3 + $0xa0] sm:$0xff]
    %v105 = vld [vmem:[#allocation3 + $0xa8] sm:$0xff]
    %v106 = vld [vmem:[#allocation3 + $0xb0] sm:$0xff]
    %v107 = vld [vmem:[#allocation3 + $0xb8] sm:$0xff]
    %v108 = vld [vmem:[#allocation3 + $0xc0] sm:$0xff]
    %v109 = vld [vmem:[#allocation3 + $0xc8] sm:$0xff]
    %v110 = vld [vmem:[#allocation3 + $0xd0] sm:$0xff]
    %v111 = vld [vmem:[#allocation3 + $0xd8] sm:$0xff]
    %v112 = vld [vmem:[#allocation3 + $0xe0] sm:$0xff]
    %v113 = vld [vmem:[#allocation3 + $0xe8] sm:$0xff]
    %v114 = vld [vmem:[#allocation3 + $0xf0] sm:$0xff]
    %v115 = vld [vmem:[#allocation3 + $0xf8] sm:$0xff]
    %v116 = vld [vmem:[#allocation3 + $0x100] sm:$0xff]
    %v117 = vld [vmem:[#allocation3 + $0x108] sm:$0xff]
    %v118 = vld [vmem:[#allocation3 + $0x110] sm:$0xff]
    %v119 = vld [vmem:[#allocation3 + $0x118] sm:$0xff]
    %v120 = vld [vmem:[#allocation3 + $0x120] sm:$0xff]
    %v121 = vld [vmem:[#allocation3 + $0x128] sm:$0xff]
    %v122 = vld [vmem:[#allocation3 + $0x130] sm:$0xff]
    %v123 = vld [vmem:[#allocation3 + $0x138] sm:$0xff]
    %v124 = vld [vmem:[#allocation3 + $0x140] sm:$0xff]
    %v125 = vld [vmem:[#allocation3 + $0x148] sm:$0xff]
    %v126 = vld [vmem:[#allocation3 + $0x150] sm:$0xff]
    %v127 = vld [vmem:[#allocation3 + $0x158] sm:$0xff]
    %v128 = vld [vmem:[#allocation3 + $0x160] sm:$0xff]
    %v129 = vld [vmem:[#allocation3 + $0x168] sm:$0xff]
    %v130 = vld [vmem:[#allocation3 + $0x170] sm:$0xff]
    %v131 = vld [vmem:[#allocation3 + $0x178] sm:$0xff]
    %v132 = vld [vmem:[#allocation3 + $0x180] sm:$0xff]
    %v133 = vld [vmem:[#allocation3 + $0x188] sm:$0xff]
    %v134 = vld [vmem:[#allocation3 + $0x190] sm:$0xff]
    %v135 = vld [vmem:[#allocation3 + $0x198] sm:$0xff]
    %v136 = vld [vmem:[#allocation3 + $0x1a0] sm:$0xff]
    %v137 = vld [vmem:[#allocation3 + $0x1a8] sm:$0xff]
    %v138 = vld [vmem:[#allocation3 + $0x1b0] sm:$0xff]
    %v139 = vld [vmem:[#allocation3 + $0x1b8] sm:$0xff]
    %v140 = vld [vmem:[#allocation3 + $0x1c0] sm:$0xff]
    %v141 = vld [vmem:[#allocation3 + $0x1c8] sm:$0xff]
    %v142 = vld [vmem:[#allocation3 + $0x1d0] sm:$0xff]
    %v143 = vld [vmem:[#allocation3 + $0x1d8] sm:$0xff]
    %v144 = vld [vmem:[#allocation3 + $0x1e0] sm:$0xff]
    %v145 = vld [vmem:[#allocation3 + $0x1e8] sm:$0xff]
    %v146 = vld [vmem:[#allocation3 + $0x1f0] sm:$0xff]
    %v147 = vld [vmem:[#allocation3 + $0x1f8] sm:$0xff]
    %v148 = vld [vmem:[#allocation3 + $0x200] sm:$0xff]
    %v149 = vld [vmem:[#allocation3 + $0x208] sm:$0xff]
    %v150 = vld [vmem:[#allocation3 + $0x210] sm:$0xff]
    %v151 = vld [vmem:[#allocation3 + $0x218] sm:$0xff]
    %v152 = vld [vmem:[#allocation3 + $0x220] sm:$0xff]
    %v153 = vld [vmem:[#allocation3 + $0x228] sm:$0xff]
    %v154 = vld [vmem:[#allocation3 + $0x230] sm:$0xff]
    %v155 = vld [vmem:[#allocation3 + $0x238] sm:$0xff]
    %v156 = vld [vmem:[#allocation3 + $0x240] sm:$0xff]
    %v157 = vld [vmem:[#allocation3 + $0x248] sm:$0xff]
    %v158 = vld [vmem:[#allocation3 + $0x250] sm:$0xff]
    %v159 = vld [vmem:[#allocation3 + $0x258] sm:$0xff]
    %v160 = vld [vmem:[#allocation3 + $0x260] sm:$0xff]
    %v161 = vld [vmem:[#allocation3 + $0x268] sm:$0xff]
    %v162 = vld [vmem:[#allocation3 + $0x270] sm:$0xff]
    %v163 = vld [vmem:[#allocation3 + $0x278] sm:$0xff]
    %v164 = vld [vmem:[#allocation3 + $0x280] sm:$0xff]
    %v165 = vld [vmem:[#allocation3 + $0x288] sm:$0xff]
    %v166 = vld [vmem:[#allocation3 + $0x290] sm:$0xff]
    %v167 = vld [vmem:[#allocation3 + $0x298] sm:$0xff]
    %v168 = vld [vmem:[#allocation3 + $0x2a0] sm:$0xff]
    %v169 = vld [vmem:[#allocation3 + $0x2a8] sm:$0xff]
    %v170 = vld [vmem:[#allocation3 + $0x2b0] sm:$0xff]
    %v171 = vld [vmem:[#allocation3 + $0x2b8] sm:$0xff]
    %v172 = vld [vmem:[#allocation3 + $0x2c0] sm:$0xff]
    %v173 = vld [vmem:[#allocation3 + $0x2c8] sm:$0xff]
    %v174 = vld [vmem:[#allocation3 + $0x2d0] sm:$0xff]
    %v175 = vld [vmem:[#allocation3 + $0x2d8] sm:$0xff]
    %v176 = vld [vmem:[#allocation3 + $0x2e0] sm:$0xff]
    %v177 = vld [vmem:[#allocation3 + $0x2e8] sm:$0xff]
    %v178 = vld [vmem:[#allocation3 + $0x2f0] sm:$0xff]
    %v179 = vld [vmem:[#allocation3 + $0x2f8] sm:$0xff]
    %v180 = vld [vmem:[#allocation3 + $0x300] sm:$0xff]
    %v181 = vld [vmem:[#allocation3 + $0x308] sm:$0xff]
    %v182 = vld [vmem:[#allocation3 + $0x310] sm:$0xff]
    %v183 = vld [vmem:[#allocation3 + $0x318] sm:$0xff]
    %v184 = vld [vmem:[#allocation3 + $0x320] sm:$0xff]
    %v185 = vld [vmem:[#allocation3 + $0x328] sm:$0xff]
    %v186 = vld [vmem:[#allocation3 + $0x330] sm:$0xff]
    %v187 = vld [vmem:[#allocation3 + $0x338] sm:$0xff]
    %v188 = vld [vmem:[#allocation3 + $0x340] sm:$0xff]
    %v189 = vld [vmem:[#allocation3 + $0x348] sm:$0xff]
    %v190 = vld [vmem:[#allocation3 + $0x350] sm:$0xff]
    %v191 = vld [vmem:[#allocation3 + $0x358] sm:$0xff]
    %v192 = vld [vmem:[#allocation3 + $0x360] sm:$0xff]
    %v193 = vld [vmem:[#allocation3 + $0x368] sm:$0xff]
    %v194 = vld [vmem:[#allocation3 + $0x370] sm:$0xff]
    %v195 = vld [vmem:[#allocation3 + $0x378] sm:$0xff]
    %v196 = vld [vmem:[#allocation3 + $0x380] sm:$0xff]
    %v197 = vld [vmem:[#allocation3 + $0x388] sm:$0xff]
    %v198 = vld [vmem:[#allocation3 + $0x390] sm:$0xff]
    %v199 = vld [vmem:[#allocation3 + $0x398] sm:$0xff]
    %v200 = vld [vmem:[#allocation3 + $0x3a0] sm:$0xff]
    %v201 = vld [vmem:[#allocation3 + $0x3a8] sm:$0xff]
    %v202 = vld [vmem:[#allocation3 + $0x3b0] sm:$0xff]
    %v203 = vld [vmem:[#allocation3 + $0x3b8] sm:$0xff]
    %v204 = vld [vmem:[#allocation3 + $0x3c0] sm:$0xff]
    %v205 = vld [vmem:[#allocation3 + $0x3c8] sm:$0xff]
    %v206 = vld [vmem:[#allocation3 + $0x3d0] sm:$0xff]
    %v207 = vld [vmem:[#allocation3 + $0x3d8] sm:$0xff]
    %v208 = vld [vmem:[#allocation3 + $0x3e0] sm:$0xff]
    %v209 = vld [vmem:[#allocation3 + $0x3e8] sm:$0xff]
    %v210 = vld [vmem:[#allocation3 + $0x3f0] sm:$0xff]
    %v211 = vld [vmem:[#allocation3 + $0x3f8] sm:$0xff]
    %v212 = vld [vmem:[#allocation3 + $0x400] sm:$0xff]
    %v213 = vld [vmem:[#allocation3 + $0x408] sm:$0xff]
    %v214 = vld [vmem:[#allocation3 + $0x410] sm:$0xff]
    %v215 = vld [vmem:[#allocation3 + $0x418] sm:$0xff]
    %v216 = vld [vmem:[#allocation3 + $0x420] sm:$0xff]
    %v217 = vld [vmem:[#allocation3 + $0x428] sm:$0xff]
    %v218 = vld [vmem:[#allocation3 + $0x430] sm:$0xff]
    %v219 = vld [vmem:[#allocation3 + $0x438] sm:$0xff]
    %v220 = vld [vmem:[#allocation3 + $0x440] sm:$0xff]
    %v221 = vld [vmem:[#allocation3 + $0x448] sm:$0xff]
    %v222 = vld [vmem:[#allocation3 + $0x450] sm:$0xff]
    %v223 = vld [vmem:[#allocation3 + $0x458] sm:$0xff]
    %v224 = vld [vmem:[#allocation3 + $0x460] sm:$0xff]
    %v225 = vld [vmem:[#allocation3 + $0x468] sm:$0xff]
    %v226 = vld [vmem:[#allocation3 + $0x470] sm:$0xff]
    %v227 = vld [vmem:[#allocation3 + $0x478] sm:$0xff]
    %v228 = vld [vmem:[#allocation3 + $0x480] sm:$0xff]
    %v229 = vld [vmem:[#allocation3 + $0x488] sm:$0xff]
    %v230 = vld [vmem:[#allocation3 + $0x490] sm:$0xff]
    %v231 = vld [vmem:[#allocation3 + $0x498] sm:$0xff]
    %v232 = vld [vmem:[#allocation3 + $0x4a0] sm:$0xff]
    %v233 = vld [vmem:[#allocation3 + $0x4a8] sm:$0xff]
    %v234 = vld [vmem:[#allocation3 + $0x4b0] sm:$0xff]
    %v235 = vld [vmem:[#allocation3 + $0x4b8] sm:$0xff]
    %v236 = vld [vmem:[#allocation3 + $0x4c0] sm:$0xff]
    %v237 = vld [vmem:[#allocation3 + $0x4c8] sm:$0xff]
    %v238 = vld [vmem:[#allocation3 + $0x4d0] sm:$0xff]
    %v239 = vld [vmem:[#allocation3 + $0x4d8] sm:$0xff]
    %v240 = vld [vmem:[#allocation3 + $0x4e0] sm:$0xff]
    %v241 = vld [vmem:[#allocation3 + $0x4e8] sm:$0xff]
    %v242 = vld [vmem:[#allocation3 + $0x4f0] sm:$0xff]
    %v243 = vld [vmem:[#allocation3 + $0x4f8] sm:$0xff]
    %v244 = vld [vmem:[#allocation3 + $0x500] sm:$0xff]
    %v245 = vld [vmem:[#allocation3 + $0x508] sm:$0xff]
    %v246 = vld [vmem:[#allocation3 + $0x510] sm:$0xff]
    %v247 = vld [vmem:[#allocation3 + $0x518] sm:$0xff]
    %v248 = vld [vmem:[#allocation3 + $0x520] sm:$0xff]
    %v249 = vld [vmem:[#allocation3 + $0x528] sm:$0xff]
    %v250 = vld [vmem:[#allocation3 + $0x530] sm:$0xff]
    %v251 = vld [vmem:[#allocation3 + $0x538] sm:$0xff]
    %v252 = vld [vmem:[#allocation3 + $0x540] sm:$0xff]
    %v253 = vld [vmem:[#allocation3 + $0x548] sm:$0xff]
    %v254 = vld [vmem:[#allocation3 + $0x550] sm:$0xff]
    %v255 = vld [vmem:[#allocation3 + $0x558] sm:$0xff]
    %v256 = vld [vmem:[#allocation3 + $0x560] sm:$0xff]
    %v257 = vld [vmem:[#allocation3 + $0x568] sm:$0xff]
    %v258 = vld [vmem:[#allocation3 + $0x570] sm:$0xff]
    %v259 = vld [vmem:[#allocation3 + $0x578] sm:$0xff]
    %v260 = vld [vmem:[#allocation3 + $0x580] sm:$0xff]
    %v261 = vld [vmem:[#allocation3 + $0x588] sm:$0xff]
    %v262 = vld [vmem:[#allocation3 + $0x590] sm:$0xff]
    %v263 = vld [vmem:[#allocation3 + $0x598] sm:$0xff]
    %v264 = vld [vmem:[#allocation3 + $0x5a0] sm:$0xff]
    %v265 = vld [vmem:[#allocation3 + $0x5a8] sm:$0xff]
    %v266 = vld [vmem:[#allocation3 + $0x5b0] sm:$0xff]
    %v267 = vld [vmem:[#allocation3 + $0x5b8] sm:$0xff]
    %v268 = vld [vmem:[#allocation3 + $0x5c0] sm:$0xff]
    %v269 = vld [vmem:[#allocation3 + $0x5c8] sm:$0xff]
    %v270 = vld [vmem:[#allocation3 + $0x5d0] sm:$0xff]
    %v271 = vld [vmem:[#allocation3 + $0x5d8] sm:$0xff]
    %v272 = vld [vmem:[#allocation3 + $0x5e0] sm:$0xff]
    %v273 = vld [vmem:[#allocation3 + $0x5e8] sm:$0xff]
    %v274 = vld [vmem:[#allocation3 + $0x5f0] sm:$0xff]
    %v275 = vld [vmem:[#allocation3 + $0x5f8] sm:$0xff]
    %v276 = vld [vmem:[#allocation3 + $0x600] sm:$0xff]
    %v277 = vld [vmem:[#allocation3 + $0x608] sm:$0xff]
    %v278 = vld [vmem:[#allocation3 + $0x610] sm:$0xff]
    %v279 = vld [vmem:[#allocation3 + $0x618] sm:$0xff]
    %v280 = vld [vmem:[#allocation3 + $0x620] sm:$0xff]
    %v281 = vld [vmem:[#allocation3 + $0x628] sm:$0xff]
    %v282 = vld [vmem:[#allocation3 + $0x630] sm:$0xff]
    %v283 = vld [vmem:[#allocation3 + $0x638] sm:$0xff]
    %v284 = vld [vmem:[#allocation3 + $0x640] sm:$0xff]
    %v285 = vld [vmem:[#allocation3 + $0x648] sm:$0xff]
    %v286 = vld [vmem:[#allocation3 + $0x650] sm:$0xff]
    %v287 = vld [vmem:[#allocation3 + $0x658] sm:$0xff]
    %v288 = vld [vmem:[#allocation3 + $0x660] sm:$0xff]
    %v289 = vld [vmem:[#allocation3 + $0x668] sm:$0xff]
    %v290 = vld [vmem:[#allocation3 + $0x670] sm:$0xff]
    %v291 = vld [vmem:[#allocation3 + $0x678] sm:$0xff]
    %v292 = vld [vmem:[#allocation3 + $0x680] sm:$0xff]
    %v293 = vld [vmem:[#allocation3 + $0x688] sm:$0xff]
    %v294 = vld [vmem:[#allocation3 + $0x690] sm:$0xff]
    %v295 = vld [vmem:[#allocation3 + $0x698] sm:$0xff]
    %v296 = vld [vmem:[#allocation3 + $0x6a0] sm:$0xff]
    %v297 = vld [vmem:[#allocation3 + $0x6a8] sm:$0xff]
    %v298 = vld [vmem:[#allocation3 + $0x6b0] sm:$0xff]
    %v299 = vld [vmem:[#allocation3 + $0x6b8] sm:$0xff]
    %v300 = vld [vmem:[#allocation3 + $0x6c0] sm:$0xff]
    %v301 = vld [vmem:[#allocation3 + $0x6c8] sm:$0xff]
    %v302 = vld [vmem:[#allocation3 + $0x6d0] sm:$0xff]
    %v303 = vld [vmem:[#allocation3 + $0x6d8] sm:$0xff]
    %v304 = vld [vmem:[#allocation3 + $0x6e0] sm:$0xff]
    %v305 = vld [vmem:[#allocation3 + $0x6e8] sm:$0xff]
    %v306 = vld [vmem:[#allocation3 + $0x6f0] sm:$0xff]
    %v307 = vld [vmem:[#allocation3 + $0x6f8] sm:$0xff]
    %v308 = vld [vmem:[#allocation3 + $0x700] sm:$0xff]
    %v309 = vld [vmem:[#allocation3 + $0x708] sm:$0xff]
    %v310 = vld [vmem:[#allocation3 + $0x710] sm:$0xff]
    %v311 = vld [vmem:[#allocation3 + $0x718] sm:$0xff]
    %v312 = vld [vmem:[#allocation3 + $0x720] sm:$0xff]
    %v313 = vld [vmem:[#allocation3 + $0x728] sm:$0xff]
    %v314 = vld [vmem:[#allocation3 + $0x730] sm:$0xff]
    %v315 = vld [vmem:[#allocation3 + $0x738] sm:$0xff]
    %v316 = vld [vmem:[#allocation3 + $0x740] sm:$0xff]
    %v317 = vld [vmem:[#allocation3 + $0x748] sm:$0xff]
    %v318 = vld [vmem:[#allocation3 + $0x750] sm:$0xff]
    %v319 = vld [vmem:[#allocation3 + $0x758] sm:$0xff]
    %v320 = vld [vmem:[#allocation3 + $0x760] sm:$0xff]
    %v321 = vld [vmem:[#allocation3 + $0x768] sm:$0xff]
    %v322 = vld [vmem:[#allocation3 + $0x770] sm:$0xff]
    %v323 = vld [vmem:[#allocation3 + $0x778] sm:$0xff]
    %v324 = vld [vmem:[#allocation3 + $0x780] sm:$0xff]
    %v325 = vld [vmem:[#allocation3 + $0x788] sm:$0xff]
    %v326 = vld [vmem:[#allocation3 + $0x790] sm:$0xff]
    %v327 = vld [vmem:[#allocation3 + $0x798] sm:$0xff]
    %v328 = vld [vmem:[#allocation3 + $0x7a0] sm:$0xff]
    %v329 = vld [vmem:[#allocation3 + $0x7a8] sm:$0xff]
    %v330 = vld [vmem:[#allocation3 + $0x7b0] sm:$0xff]
    %v331 = vld [vmem:[#allocation3 + $0x7b8] sm:$0xff]
    %v332 = vld [vmem:[#allocation3 + $0x7c0] sm:$0xff]
    %v333 = vld [vmem:[#allocation3 + $0x7c8] sm:$0xff]
    %v334 = vld [vmem:[#allocation3 + $0x7d0] sm:$0xff]
    %v335 = vld [vmem:[#allocation3 + $0x7d8] sm:$0xff]
    %v336 = vld [vmem:[#allocation3 + $0x7e0] sm:$0xff]
    %v337 = vld [vmem:[#allocation3 + $0x7e8] sm:$0xff]
    %v338 = vld [vmem:[#allocation3 + $0x7f0] sm:$0xff]
    %v339 = vld [vmem:[#allocation3 + $0x7f8] sm:$0xff]
    %v340 = vld [vmem:[%s2] sm:$0xf]
    %v342 = vperm.slane %v340, 0
    %v343 = vperm.slane %v340, 1
    %v344 = vperm.slane %v340, 2
    %v345 = vperm.slane %v340, 3
    %v606 = vunpack.c.l.b16 %v84
    %v607 = vunpack.c.h.b16 %v84
    %v608 = vunpack.c.l.b16 %v85
    %v609 = vunpack.c.h.b16 %v85
    %v610 = vunpack.c.l.b16 %v86
    %v611 = vunpack.c.h.b16 %v86
    %v612 = vunpack.c.l.b16 %v87
    %v613 = vunpack.c.h.b16 %v87
    %v614 = vunpack.c.l.b16 %v88
    %v615 = vunpack.c.h.b16 %v88
    %v616 = vunpack.c.l.b16 %v89
    %v617 = vunpack.c.h.b16 %v89
    %v618 = vunpack.c.l.b16 %v90
    %v619 = vunpack.c.h.b16 %v90
    %v620 = vunpack.c.l.b16 %v91
    %v621 = vunpack.c.h.b16 %v91
    %v622 = vunpack.c.l.b16 %v92
    %v623 = vunpack.c.h.b16 %v92
    %v624 = vunpack.c.l.b16 %v93
    %v625 = vunpack.c.h.b16 %v93
    %v626 = vunpack.c.l.b16 %v94
    %v627 = vunpack.c.h.b16 %v94
    %v628 = vunpack.c.l.b16 %v95
    %v629 = vunpack.c.h.b16 %v95
    %v630 = vunpack.c.l.b16 %v96
    %v631 = vunpack.c.h.b16 %v96
    %v632 = vunpack.c.l.b16 %v97
    %v633 = vunpack.c.h.b16 %v97
    %v634 = vunpack.c.l.b16 %v98
    %v635 = vunpack.c.h.b16 %v98
    %v636 = vunpack.c.l.b16 %v99
    %v637 = vunpack.c.h.b16 %v99
    %v638 = vunpack.c.l.b16 %v100
    %v639 = vunpack.c.h.b16 %v100
    %v640 = vunpack.c.l.b16 %v101
    %v641 = vunpack.c.h.b16 %v101
    %v642 = vunpack.c.l.b16 %v102
    %v643 = vunpack.c.h.b16 %v102
    %v644 = vunpack.c.l.b16 %v103
    %v645 = vunpack.c.h.b16 %v103
    %v646 = vunpack.c.l.b16 %v104
    %v647 = vunpack.c.h.b16 %v104
    %v648 = vunpack.c.l.b16 %v105
    %v649 = vunpack.c.h.b16 %v105
    %v650 = vunpack.c.l.b16 %v106
    %v651 = vunpack.c.h.b16 %v106
    %v652 = vunpack.c.l.b16 %v107
    %v653 = vunpack.c.h.b16 %v107
    %v654 = vunpack.c.l.b16 %v108
    %v655 = vunpack.c.h.b16 %v108
    %v656 = vunpack.c.l.b16 %v109
    %v657 = vunpack.c.h.b16 %v109
    %v658 = vunpack.c.l.b16 %v110
    %v659 = vunpack.c.h.b16 %v110
    %v660 = vunpack.c.l.b16 %v111
    %v661 = vunpack.c.h.b16 %v111
    %v662 = vunpack.c.l.b16 %v112
    %v663 = vunpack.c.h.b16 %v112
    %v664 = vunpack.c.l.b16 %v113
    %v665 = vunpack.c.h.b16 %v113
    %v666 = vunpack.c.l.b16 %v114
    %v667 = vunpack.c.h.b16 %v114
    %v668 = vunpack.c.l.b16 %v115
    %v669 = vunpack.c.h.b16 %v115
    %v670 = vunpack.c.l.b16 %v116
    %v671 = vunpack.c.h.b16 %v116
    %v672 = vunpack.c.l.b16 %v117
    %v673 = vunpack.c.h.b16 %v117
    %v674 = vunpack.c.l.b16 %v118
    %v675 = vunpack.c.h.b16 %v118
    %v676 = vunpack.c.l.b16 %v119
    %v677 = vunpack.c.h.b16 %v119
    %v678 = vunpack.c.l.b16 %v120
    %v679 = vunpack.c.h.b16 %v120
    %v680 = vunpack.c.l.b16 %v121
    %v681 = vunpack.c.h.b16 %v121
    %v682 = vunpack.c.l.b16 %v122
    %v683 = vunpack.c.h.b16 %v122
    %v684 = vunpack.c.l.b16 %v123
    %v685 = vunpack.c.h.b16 %v123
    %v686 = vunpack.c.l.b16 %v124
    %v687 = vunpack.c.h.b16 %v124
    %v688 = vunpack.c.l.b16 %v125
    %v689 = vunpack.c.h.b16 %v125
    %v690 = vunpack.c.l.b16 %v126
    %v691 = vunpack.c.h.b16 %v126
    %v692 = vunpack.c.l.b16 %v127
    %v693 = vunpack.c.h.b16 %v127
    %v694 = vunpack.c.l.b16 %v128
    %v695 = vunpack.c.h.b16 %v128
    %v696 = vunpack.c.l.b16 %v129
    %v697 = vunpack.c.h.b16 %v129
    %v698 = vunpack.c.l.b16 %v130
    %v699 = vunpack.c.h.b16 %v130
    %v700 = vunpack.c.l.b16 %v131
    %v701 = vunpack.c.h.b16 %v131
    %v702 = vunpack.c.l.b16 %v132
    %v703 = vunpack.c.h.b16 %v132
    %v704 = vunpack.c.l.b16 %v133
    %v705 = vunpack.c.h.b16 %v133
    %v706 = vunpack.c.l.b16 %v134
    %v707 = vunpack.c.h.b16 %v134
    %v708 = vunpack.c.l.b16 %v135
    %v709 = vunpack.c.h.b16 %v135
    %v710 = vunpack.c.l.b16 %v136
    %v711 = vunpack.c.h.b16 %v136
    %v712 = vunpack.c.l.b16 %v137
    %v713 = vunpack.c.h.b16 %v137
    %v714 = vunpack.c.l.b16 %v138
    %v715 = vunpack.c.h.b16 %v138
    %v716 = vunpack.c.l.b16 %v139
    %v717 = vunpack.c.h.b16 %v139
    %v718 = vunpack.c.l.b16 %v140
    %v719 = vunpack.c.h.b16 %v140
    %v720 = vunpack.c.l.b16 %v141
    %v721 = vunpack.c.h.b16 %v141
    %v722 = vunpack.c.l.b16 %v142
    %v723 = vunpack.c.h.b16 %v142
    %v724 = vunpack.c.l.b16 %v143
    %v725 = vunpack.c.h.b16 %v143
    %v726 = vunpack.c.l.b16 %v144
    %v727 = vunpack.c.h.b16 %v144
    %v728 = vunpack.c.l.b16 %v145
    %v729 = vunpack.c.h.b16 %v145
    %v730 = vunpack.c.l.b16 %v146
    %v731 = vunpack.c.h.b16 %v146
    %v732 = vunpack.c.l.b16 %v147
    %v733 = vunpack.c.h.b16 %v147
    %v734 = vunpack.c.l.b16 %v148
    %v735 = vunpack.c.h.b16 %v148
    %v736 = vunpack.c.l.b16 %v149
    %v737 = vunpack.c.h.b16 %v149
    %v738 = vunpack.c.l.b16 %v150
    %v739 = vunpack.c.h.b16 %v150
    %v740 = vunpack.c.l.b16 %v151
    %v741 = vunpack.c.h.b16 %v151
    %v742 = vunpack.c.l.b16 %v152
    %v743 = vunpack.c.h.b16 %v152
    %v744 = vunpack.c.l.b16 %v153
    %v745 = vunpack.c.h.b16 %v153
    %v746 = vunpack.c.l.b16 %v154
    %v747 = vunpack.c.h.b16 %v154
    %v748 = vunpack.c.l.b16 %v155
    %v749 = vunpack.c.h.b16 %v155
    %v750 = vunpack.c.l.b16 %v156
    %v751 = vunpack.c.h.b16 %v156
    %v752 = vunpack.c.l.b16 %v157
    %v753 = vunpack.c.h.b16 %v157
    %v754 = vunpack.c.l.b16 %v158
    %v755 = vunpack.c.h.b16 %v158
    %v756 = vunpack.c.l.b16 %v159
    %v757 = vunpack.c.h.b16 %v159
    %v758 = vunpack.c.l.b16 %v160
    %v759 = vunpack.c.h.b16 %v160
    %v760 = vunpack.c.l.b16 %v161
    %v761 = vunpack.c.h.b16 %v161
    %v762 = vunpack.c.l.b16 %v162
    %v763 = vunpack.c.h.b16 %v162
    %v764 = vunpack.c.l.b16 %v163
    %v765 = vunpack.c.h.b16 %v163
    %v766 = vunpack.c.l.b16 %v164
    %v767 = vunpack.c.h.b16 %v164
    %v768 = vunpack.c.l.b16 %v165
    %v769 = vunpack.c.h.b16 %v165
    %v770 = vunpack.c.l.b16 %v166
    %v771 = vunpack.c.h.b16 %v166
    %v772 = vunpack.c.l.b16 %v167
    %v773 = vunpack.c.h.b16 %v167
    %v774 = vunpack.c.l.b16 %v168
    %v775 = vunpack.c.h.b16 %v168
    %v776 = vunpack.c.l.b16 %v169
    %v777 = vunpack.c.h.b16 %v169
    %v778 = vunpack.c.l.b16 %v170
    %v779 = vunpack.c.h.b16 %v170
    %v780 = vunpack.c.l.b16 %v171
    %v781 = vunpack.c.h.b16 %v171
    %v782 = vunpack.c.l.b16 %v172
    %v783 = vunpack.c.h.b16 %v172
    %v784 = vunpack.c.l.b16 %v173
    %v785 = vunpack.c.h.b16 %v173
    %v786 = vunpack.c.l.b16 %v174
    %v787 = vunpack.c.h.b16 %v174
    %v788 = vunpack.c.l.b16 %v175
    %v789 = vunpack.c.h.b16 %v175
    %v790 = vunpack.c.l.b16 %v176
    %v791 = vunpack.c.h.b16 %v176
    %v792 = vunpack.c.l.b16 %v177
    %v793 = vunpack.c.h.b16 %v177
    %v794 = vunpack.c.l.b16 %v178
    %v795 = vunpack.c.h.b16 %v178
    %v796 = vunpack.c.l.b16 %v179
    %v797 = vunpack.c.h.b16 %v179
    %v798 = vunpack.c.l.b16 %v180
    %v799 = vunpack.c.h.b16 %v180
    %v800 = vunpack.c.l.b16 %v181
    %v801 = vunpack.c.h.b16 %v181
    %v802 = vunpack.c.l.b16 %v182
    %v803 = vunpack.c.h.b16 %v182
    %v804 = vunpack.c.l.b16 %v183
    %v805 = vunpack.c.h.b16 %v183
    %v806 = vunpack.c.l.b16 %v184
    %v807 = vunpack.c.h.b16 %v184
    %v808 = vunpack.c.l.b16 %v185
    %v809 = vunpack.c.h.b16 %v185
    %v810 = vunpack.c.l.b16 %v186
    %v811 = vunpack.c.h.b16 %v186
    %v812 = vunpack.c.l.b16 %v187
    %v813 = vunpack.c.h.b16 %v187
    %v814 = vunpack.c.l.b16 %v188
    %v815 = vunpack.c.h.b16 %v188
    %v816 = vunpack.c.l.b16 %v189
    %v817 = vunpack.c.h.b16 %v189
    %v818 = vunpack.c.l.b16 %v190
    %v819 = vunpack.c.h.b16 %v190
    %v820 = vunpack.c.l.b16 %v191
    %v821 = vunpack.c.h.b16 %v191
    %v822 = vunpack.c.l.b16 %v192
    %v823 = vunpack.c.h.b16 %v192
    %v824 = vunpack.c.l.b16 %v193
    %v825 = vunpack.c.h.b16 %v193
    %v826 = vunpack.c.l.b16 %v194
    %v827 = vunpack.c.h.b16 %v194
    %v828 = vunpack.c.l.b16 %v195
    %v829 = vunpack.c.h.b16 %v195
    %v830 = vunpack.c.l.b16 %v196
    %v831 = vunpack.c.h.b16 %v196
    %v832 = vunpack.c.l.b16 %v197
    %v833 = vunpack.c.h.b16 %v197
    %v834 = vunpack.c.l.b16 %v198
    %v835 = vunpack.c.h.b16 %v198
    %v836 = vunpack.c.l.b16 %v199
    %v837 = vunpack.c.h.b16 %v199
    %v838 = vunpack.c.l.b16 %v200
    %v839 = vunpack.c.h.b16 %v200
    %v840 = vunpack.c.l.b16 %v201
    %v841 = vunpack.c.h.b16 %v201
    %v842 = vunpack.c.l.b16 %v202
    %v843 = vunpack.c.h.b16 %v202
    %v844 = vunpack.c.l.b16 %v203
    %v845 = vunpack.c.h.b16 %v203
    %v846 = vunpack.c.l.b16 %v204
    %v847 = vunpack.c.h.b16 %v204
    %v848 = vunpack.c.l.b16 %v205
    %v849 = vunpack.c.h.b16 %v205
    %v850 = vunpack.c.l.b16 %v206
    %v851 = vunpack.c.h.b16 %v206
    %v852 = vunpack.c.l.b16 %v207
    %v853 = vunpack.c.h.b16 %v207
    %v854 = vunpack.c.l.b16 %v208
    %v855 = vunpack.c.h.b16 %v208
    %v856 = vunpack.c.l.b16 %v209
    %v857 = vunpack.c.h.b16 %v209
    %v858 = vunpack.c.l.b16 %v210
    %v859 = vunpack.c.h.b16 %v210
    %v860 = vunpack.c.l.b16 %v211
    %v861 = vunpack.c.h.b16 %v211
    %v862 = vunpack.c.l.b16 %v212
    %v863 = vunpack.c.h.b16 %v212
    %v864 = vunpack.c.l.b16 %v213
    %v865 = vunpack.c.h.b16 %v213
    %v866 = vunpack.c.l.b16 %v214
    %v867 = vunpack.c.h.b16 %v214
    %v868 = vunpack.c.l.b16 %v215
    %v869 = vunpack.c.h.b16 %v215
    %v870 = vunpack.c.l.b16 %v216
    %v871 = vunpack.c.h.b16 %v216
    %v872 = vunpack.c.l.b16 %v217
    %v873 = vunpack.c.h.b16 %v217
    %v874 = vunpack.c.l.b16 %v218
    %v875 = vunpack.c.h.b16 %v218
    %v876 = vunpack.c.l.b16 %v219
    %v877 = vunpack.c.h.b16 %v219
    %v878 = vunpack.c.l.b16 %v220
    %v879 = vunpack.c.h.b16 %v220
    %v880 = vunpack.c.l.b16 %v221
    %v881 = vunpack.c.h.b16 %v221
    %v882 = vunpack.c.l.b16 %v222
    %v883 = vunpack.c.h.b16 %v222
    %v884 = vunpack.c.l.b16 %v223
    %v885 = vunpack.c.h.b16 %v223
    %v886 = vunpack.c.l.b16 %v224
    %v887 = vunpack.c.h.b16 %v224
    %v888 = vunpack.c.l.b16 %v225
    %v889 = vunpack.c.h.b16 %v225
    %v890 = vunpack.c.l.b16 %v226
    %v891 = vunpack.c.h.b16 %v226
    %v892 = vunpack.c.l.b16 %v227
    %v893 = vunpack.c.h.b16 %v227
    %v894 = vunpack.c.l.b16 %v228
    %v895 = vunpack.c.h.b16 %v228
    %v896 = vunpack.c.l.b16 %v229
    %v897 = vunpack.c.h.b16 %v229
    %v898 = vunpack.c.l.b16 %v230
    %v899 = vunpack.c.h.b16 %v230
    %v900 = vunpack.c.l.b16 %v231
    %v901 = vunpack.c.h.b16 %v231
    %v902 = vunpack.c.l.b16 %v232
    %v903 = vunpack.c.h.b16 %v232
    %v904 = vunpack.c.l.b16 %v233
    %v905 = vunpack.c.h.b16 %v233
    %v906 = vunpack.c.l.b16 %v234
    %v907 = vunpack.c.h.b16 %v234
    %v908 = vunpack.c.l.b16 %v235
    %v909 = vunpack.c.h.b16 %v235
    %v910 = vunpack.c.l.b16 %v236
    %v911 = vunpack.c.h.b16 %v236
    %v912 = vunpack.c.l.b16 %v237
    %v913 = vunpack.c.h.b16 %v237
    %v914 = vunpack.c.l.b16 %v238
    %v915 = vunpack.c.h.b16 %v238
    %v916 = vunpack.c.l.b16 %v239
    %v917 = vunpack.c.h.b16 %v239
    %v918 = vunpack.c.l.b16 %v240
    %v919 = vunpack.c.h.b16 %v240
    %v920 = vunpack.c.l.b16 %v241
    %v921 = vunpack.c.h.b16 %v241
    %v922 = vunpack.c.l.b16 %v242
    %v923 = vunpack.c.h.b16 %v242
    %v924 = vunpack.c.l.b16 %v243
    %v925 = vunpack.c.h.b16 %v243
    %v926 = vunpack.c.l.b16 %v244
    %v927 = vunpack.c.h.b16 %v244
    %v928 = vunpack.c.l.b16 %v245
    %v929 = vunpack.c.h.b16 %v245
    %v930 = vunpack.c.l.b16 %v246
    %v931 = vunpack.c.h.b16 %v246
    %v932 = vunpack.c.l.b16 %v247
    %v933 = vunpack.c.h.b16 %v247
    %v934 = vunpack.c.l.b16 %v248
    %v935 = vunpack.c.h.b16 %v248
    %v936 = vunpack.c.l.b16 %v249
    %v937 = vunpack.c.h.b16 %v249
    %v938 = vunpack.c.l.b16 %v250
    %v939 = vunpack.c.h.b16 %v250
    %v940 = vunpack.c.l.b16 %v251
    %v941 = vunpack.c.h.b16 %v251
    %v942 = vunpack.c.l.b16 %v252
    %v943 = vunpack.c.h.b16 %v252
    %v944 = vunpack.c.l.b16 %v253
    %v945 = vunpack.c.h.b16 %v253
    %v946 = vunpack.c.l.b16 %v254
    %v947 = vunpack.c.h.b16 %v254
    %v948 = vunpack.c.l.b16 %v255
    %v949 = vunpack.c.h.b16 %v255
    %v950 = vunpack.c.l.b16 %v256
    %v951 = vunpack.c.h.b16 %v256
    %v952 = vunpack.c.l.b16 %v257
    %v953 = vunpack.c.h.b16 %v257
    %v954 = vunpack.c.l.b16 %v258
    %v955 = vunpack.c.h.b16 %v258
    %v956 = vunpack.c.l.b16 %v259
    %v957 = vunpack.c.h.b16 %v259
    %v958 = vunpack.c.l.b16 %v260
    %v959 = vunpack.c.h.b16 %v260
    %v960 = vunpack.c.l.b16 %v261
    %v961 = vunpack.c.h.b16 %v261
    %v962 = vunpack.c.l.b16 %v262
    %v963 = vunpack.c.h.b16 %v262
    %v964 = vunpack.c.l.b16 %v263
    %v965 = vunpack.c.h.b16 %v263
    %v966 = vunpack.c.l.b16 %v264
    %v967 = vunpack.c.h.b16 %v264
    %v968 = vunpack.c.l.b16 %v265
    %v969 = vunpack.c.h.b16 %v265
    %v970 = vunpack.c.l.b16 %v266
    %v971 = vunpack.c.h.b16 %v266
    %v972 = vunpack.c.l.b16 %v267
    %v973 = vunpack.c.h.b16 %v267
    %v974 = vunpack.c.l.b16 %v268
    %v975 = vunpack.c.h.b16 %v268
    %v976 = vunpack.c.l.b16 %v269
    %v977 = vunpack.c.h.b16 %v269
    %v978 = vunpack.c.l.b16 %v270
    %v979 = vunpack.c.h.b16 %v270
    %v980 = vunpack.c.l.b16 %v271
    %v981 = vunpack.c.h.b16 %v271
    %v982 = vunpack.c.l.b16 %v272
    %v983 = vunpack.c.h.b16 %v272
    %v984 = vunpack.c.l.b16 %v273
    %v985 = vunpack.c.h.b16 %v273
    %v986 = vunpack.c.l.b16 %v274
    %v987 = vunpack.c.h.b16 %v274
    %v988 = vunpack.c.l.b16 %v275
    %v989 = vunpack.c.h.b16 %v275
    %v990 = vunpack.c.l.b16 %v276
    %v991 = vunpack.c.h.b16 %v276
    %v992 = vunpack.c.l.b16 %v277
    %v993 = vunpack.c.h.b16 %v277
    %v994 = vunpack.c.l.b16 %v278
    %v995 = vunpack.c.h.b16 %v278
    %v996 = vunpack.c.l.b16 %v279
    %v997 = vunpack.c.h.b16 %v279
    %v998 = vunpack.c.l.b16 %v280
    %v999 = vunpack.c.h.b16 %v280
    %v1000 = vunpack.c.l.b16 %v281
    %v1001 = vunpack.c.h.b16 %v281
    %v1002 = vunpack.c.l.b16 %v282
    %v1003 = vunpack.c.h.b16 %v282
    %v1004 = vunpack.c.l.b16 %v283
    %v1005 = vunpack.c.h.b16 %v283
    %v1006 = vunpack.c.l.b16 %v284
    %v1007 = vunpack.c.h.b16 %v284
    %v1008 = vunpack.c.l.b16 %v285
    %v1009 = vunpack.c.h.b16 %v285
    %v1010 = vunpack.c.l.b16 %v286
    %v1011 = vunpack.c.h.b16 %v286
    %v1012 = vunpack.c.l.b16 %v287
    %v1013 = vunpack.c.h.b16 %v287
    %v1014 = vunpack.c.l.b16 %v288
    %v1015 = vunpack.c.h.b16 %v288
    %v1016 = vunpack.c.l.b16 %v289
    %v1017 = vunpack.c.h.b16 %v289
    %v1018 = vunpack.c.l.b16 %v290
    %v1019 = vunpack.c.h.b16 %v290
    %v1020 = vunpack.c.l.b16 %v291
    %v1021 = vunpack.c.h.b16 %v291
    %v1022 = vunpack.c.l.b16 %v292
    %v1023 = vunpack.c.h.b16 %v292
    %v1024 = vunpack.c.l.b16 %v293
    %v1025 = vunpack.c.h.b16 %v293
    %v1026 = vunpack.c.l.b16 %v294
    %v1027 = vunpack.c.h.b16 %v294
    %v1028 = vunpack.c.l.b16 %v295
    %v1029 = vunpack.c.h.b16 %v295
    %v1030 = vunpack.c.l.b16 %v296
    %v1031 = vunpack.c.h.b16 %v296
    %v1032 = vunpack.c.l.b16 %v297
    %v1033 = vunpack.c.h.b16 %v297
    %v1034 = vunpack.c.l.b16 %v298
    %v1035 = vunpack.c.h.b16 %v298
    %v1036 = vunpack.c.l.b16 %v299
    %v1037 = vunpack.c.h.b16 %v299
    %v1038 = vunpack.c.l.b16 %v300
    %v1039 = vunpack.c.h.b16 %v300
    %v1040 = vunpack.c.l.b16 %v301
    %v1041 = vunpack.c.h.b16 %v301
    %v1042 = vunpack.c.l.b16 %v302
    %v1043 = vunpack.c.h.b16 %v302
    %v1044 = vunpack.c.l.b16 %v303
    %v1045 = vunpack.c.h.b16 %v303
    %v1046 = vunpack.c.l.b16 %v304
    %v1047 = vunpack.c.h.b16 %v304
    %v1048 = vunpack.c.l.b16 %v305
    %v1049 = vunpack.c.h.b16 %v305
    %v1050 = vunpack.c.l.b16 %v306
    %v1051 = vunpack.c.h.b16 %v306
    %v1052 = vunpack.c.l.b16 %v307
    %v1053 = vunpack.c.h.b16 %v307
    %v1054 = vunpack.c.l.b16 %v308
    %v1055 = vunpack.c.h.b16 %v308
    %v1056 = vunpack.c.l.b16 %v309
    %v1057 = vunpack.c.h.b16 %v309
    %v1058 = vunpack.c.l.b16 %v310
    %v1059 = vunpack.c.h.b16 %v310
    %v1060 = vunpack.c.l.b16 %v311
    %v1061 = vunpack.c.h.b16 %v311
    %v1062 = vunpack.c.l.b16 %v312
    %v1063 = vunpack.c.h.b16 %v312
    %v1064 = vunpack.c.l.b16 %v313
    %v1065 = vunpack.c.h.b16 %v313
    %v1066 = vunpack.c.l.b16 %v314
    %v1067 = vunpack.c.h.b16 %v314
    %v1068 = vunpack.c.l.b16 %v315
    %v1069 = vunpack.c.h.b16 %v315
    %v1070 = vunpack.c.l.b16 %v316
    %v1071 = vunpack.c.h.b16 %v316
    %v1072 = vunpack.c.l.b16 %v317
    %v1073 = vunpack.c.h.b16 %v317
    %v1074 = vunpack.c.l.b16 %v318
    %v1075 = vunpack.c.h.b16 %v318
    %v1076 = vunpack.c.l.b16 %v319
    %v1077 = vunpack.c.h.b16 %v319
    %v1078 = vunpack.c.l.b16 %v320
    %v1079 = vunpack.c.h.b16 %v320
    %v1080 = vunpack.c.l.b16 %v321
    %v1081 = vunpack.c.h.b16 %v321
    %v1082 = vunpack.c.l.b16 %v322
    %v1083 = vunpack.c.h.b16 %v322
    %v1084 = vunpack.c.l.b16 %v323
    %v1085 = vunpack.c.h.b16 %v323
    %v1086 = vunpack.c.l.b16 %v324
    %v1087 = vunpack.c.h.b16 %v324
    %v1088 = vunpack.c.l.b16 %v325
    %v1089 = vunpack.c.h.b16 %v325
    %v1090 = vunpack.c.l.b16 %v326
    %v1091 = vunpack.c.h.b16 %v326
    %v1092 = vunpack.c.l.b16 %v327
    %v1093 = vunpack.c.h.b16 %v327
    %v1094 = vunpack.c.l.b16 %v328
    %v1095 = vunpack.c.h.b16 %v328
    %v1096 = vunpack.c.l.b16 %v329
    %v1097 = vunpack.c.h.b16 %v329
    %v1098 = vunpack.c.l.b16 %v330
    %v1099 = vunpack.c.h.b16 %v330
    %v1100 = vunpack.c.l.b16 %v331
    %v1101 = vunpack.c.h.b16 %v331
    %v1102 = vunpack.c.l.b16 %v332
    %v1103 = vunpack.c.h.b16 %v332
    %v1104 = vunpack.c.l.b16 %v333
    %v1105 = vunpack.c.h.b16 %v333
    %v1106 = vunpack.c.l.b16 %v334
    %v1107 = vunpack.c.h.b16 %v334
    %v1108 = vunpack.c.l.b16 %v335
    %v1109 = vunpack.c.h.b16 %v335
    %v1110 = vunpack.c.l.b16 %v336
    %v1111 = vunpack.c.h.b16 %v336
    %v1112 = vunpack.c.l.b16 %v337
    %v1113 = vunpack.c.h.b16 %v337
    %v1114 = vunpack.c.l.b16 %v338
    %v1115 = vunpack.c.h.b16 %v338
    %v1116 = vunpack.c.l.b16 %v339
    %v1117 = vunpack.c.h.b16 %v339
    %v1118 = vpack.c.b16 %v610, %v606
    %v1119 = vpack.c.b16 %v611, %v607
    %v1120 = vpack.c.b16 %v612, %v608
    %v1121 = vpack.c.b16 %v613, %v609
    %v1122 = vpack.c.b16 %v618, %v614
    %v1123 = vpack.c.b16 %v619, %v615
    %v1124 = vpack.c.b16 %v620, %v616
    %v1125 = vpack.c.b16 %v621, %v617
    %v1126 = vpack.c.b16 %v626, %v622
    %v1127 = vpack.c.b16 %v627, %v623
    %v1128 = vpack.c.b16 %v628, %v624
    %v1129 = vpack.c.b16 %v629, %v625
    %v1130 = vpack.c.b16 %v634, %v630
    %v1131 = vpack.c.b16 %v635, %v631
    %v1132 = vpack.c.b16 %v636, %v632
    %v1133 = vpack.c.b16 %v637, %v633
    %v1134 = vpack.c.b16 %v642, %v638
    %v1135 = vpack.c.b16 %v643, %v639
    %v1136 = vpack.c.b16 %v644, %v640
    %v1137 = vpack.c.b16 %v645, %v641
    %v1138 = vpack.c.b16 %v650, %v646
    %v1139 = vpack.c.b16 %v651, %v647
    %v1140 = vpack.c.b16 %v652, %v648
    %v1141 = vpack.c.b16 %v653, %v649
    %v1142 = vpack.c.b16 %v658, %v654
    %v1143 = vpack.c.b16 %v659, %v655
    %v1144 = vpack.c.b16 %v660, %v656
    %v1145 = vpack.c.b16 %v661, %v657
    %v1146 = vpack.c.b16 %v666, %v662
    %v1147 = vpack.c.b16 %v667, %v663
    %v1148 = vpack.c.b16 %v668, %v664
    %v1149 = vpack.c.b16 %v669, %v665
    %v1150 = vpack.c.b16 %v674, %v670
    %v1151 = vpack.c.b16 %v675, %v671
    %v1152 = vpack.c.b16 %v676, %v672
    %v1153 = vpack.c.b16 %v677, %v673
    %v1154 = vpack.c.b16 %v682, %v678
    %v1155 = vpack.c.b16 %v683, %v679
    %v1156 = vpack.c.b16 %v684, %v680
    %v1157 = vpack.c.b16 %v685, %v681
    %v1158 = vpack.c.b16 %v690, %v686
    %v1159 = vpack.c.b16 %v691, %v687
    %v1160 = vpack.c.b16 %v692, %v688
    %v1161 = vpack.c.b16 %v693, %v689
    %v1162 = vpack.c.b16 %v698, %v694
    %v1163 = vpack.c.b16 %v699, %v695
    %v1164 = vpack.c.b16 %v700, %v696
    %v1165 = vpack.c.b16 %v701, %v697
    %v1166 = vpack.c.b16 %v706, %v702
    %v1167 = vpack.c.b16 %v707, %v703
    %v1168 = vpack.c.b16 %v708, %v704
    %v1169 = vpack.c.b16 %v709, %v705
    %v1170 = vpack.c.b16 %v714, %v710
    %v1171 = vpack.c.b16 %v715, %v711
    %v1172 = vpack.c.b16 %v716, %v712
    %v1173 = vpack.c.b16 %v717, %v713
    %v1174 = vpack.c.b16 %v722, %v718
    %v1175 = vpack.c.b16 %v723, %v719
    %v1176 = vpack.c.b16 %v724, %v720
    %v1177 = vpack.c.b16 %v725, %v721
    %v1178 = vpack.c.b16 %v730, %v726
    %v1179 = vpack.c.b16 %v731, %v727
    %v1180 = vpack.c.b16 %v732, %v728
    %v1181 = vpack.c.b16 %v733, %v729
    %v1182 = vpack.c.b16 %v738, %v734
    %v1183 = vpack.c.b16 %v739, %v735
    %v1184 = vpack.c.b16 %v740, %v736
    %v1185 = vpack.c.b16 %v741, %v737
    %v1186 = vpack.c.b16 %v746, %v742
    %v1187 = vpack.c.b16 %v747, %v743
    %v1188 = vpack.c.b16 %v748, %v744
    %v1189 = vpack.c.b16 %v749, %v745
    %v1190 = vpack.c.b16 %v754, %v750
    %v1191 = vpack.c.b16 %v755, %v751
    %v1192 = vpack.c.b16 %v756, %v752
    %v1193 = vpack.c.b16 %v757, %v753
    %v1194 = vpack.c.b16 %v762, %v758
    %v1195 = vpack.c.b16 %v763, %v759
    %v1196 = vpack.c.b16 %v764, %v760
    %v1197 = vpack.c.b16 %v765, %v761
    %v1198 = vpack.c.b16 %v770, %v766
    %v1199 = vpack.c.b16 %v771, %v767
    %v1200 = vpack.c.b16 %v772, %v768
    %v1201 = vpack.c.b16 %v773, %v769
    %v1202 = vpack.c.b16 %v778, %v774
    %v1203 = vpack.c.b16 %v779, %v775
    %v1204 = vpack.c.b16 %v780, %v776
    %v1205 = vpack.c.b16 %v781, %v777
    %v1206 = vpack.c.b16 %v786, %v782
    %v1207 = vpack.c.b16 %v787, %v783
    %v1208 = vpack.c.b16 %v788, %v784
    %v1209 = vpack.c.b16 %v789, %v785
    %v1210 = vpack.c.b16 %v794, %v790
    %v1211 = vpack.c.b16 %v795, %v791
    %v1212 = vpack.c.b16 %v796, %v792
    %v1213 = vpack.c.b16 %v797, %v793
    %v1214 = vpack.c.b16 %v802, %v798
    %v1215 = vpack.c.b16 %v803, %v799
    %v1216 = vpack.c.b16 %v804, %v800
    %v1217 = vpack.c.b16 %v805, %v801
    %v1218 = vpack.c.b16 %v810, %v806
    %v1219 = vpack.c.b16 %v811, %v807
    %v1220 = vpack.c.b16 %v812, %v808
    %v1221 = vpack.c.b16 %v813, %v809
    %v1222 = vpack.c.b16 %v818, %v814
    %v1223 = vpack.c.b16 %v819, %v815
    %v1224 = vpack.c.b16 %v820, %v816
    %v1225 = vpack.c.b16 %v821, %v817
    %v1226 = vpack.c.b16 %v826, %v822
    %v1227 = vpack.c.b16 %v827, %v823
    %v1228 = vpack.c.b16 %v828, %v824
    %v1229 = vpack.c.b16 %v829, %v825
    %v1230 = vpack.c.b16 %v834, %v830
    %v1231 = vpack.c.b16 %v835, %v831
    %v1232 = vpack.c.b16 %v836, %v832
    %v1233 = vpack.c.b16 %v837, %v833
    %v1234 = vpack.c.b16 %v842, %v838
    %v1235 = vpack.c.b16 %v843, %v839
    %v1236 = vpack.c.b16 %v844, %v840
    %v1237 = vpack.c.b16 %v845, %v841
    %v1238 = vpack.c.b16 %v850, %v846
    %v1239 = vpack.c.b16 %v851, %v847
    %v1240 = vpack.c.b16 %v852, %v848
    %v1241 = vpack.c.b16 %v853, %v849
    %v1242 = vpack.c.b16 %v858, %v854
    %v1243 = vpack.c.b16 %v859, %v855
    %v1244 = vpack.c.b16 %v860, %v856
    %v1245 = vpack.c.b16 %v861, %v857
    %v1246 = vpack.c.b16 %v866, %v862
    %v1247 = vpack.c.b16 %v867, %v863
    %v1248 = vpack.c.b16 %v868, %v864
    %v1249 = vpack.c.b16 %v869, %v865
    %v1250 = vpack.c.b16 %v874, %v870
    %v1251 = vpack.c.b16 %v875, %v871
    %v1252 = vpack.c.b16 %v876, %v872
    %v1253 = vpack.c.b16 %v877, %v873
    %v1254 = vpack.c.b16 %v882, %v878
    %v1255 = vpack.c.b16 %v883, %v879
    %v1256 = vpack.c.b16 %v884, %v880
    %v1257 = vpack.c.b16 %v885, %v881
    %v1258 = vpack.c.b16 %v890, %v886
    %v1259 = vpack.c.b16 %v891, %v887
    %v1260 = vpack.c.b16 %v892, %v888
    %v1261 = vpack.c.b16 %v893, %v889
    %v1262 = vpack.c.b16 %v898, %v894
    %v1263 = vpack.c.b16 %v899, %v895
    %v1264 = vpack.c.b16 %v900, %v896
    %v1265 = vpack.c.b16 %v901, %v897
    %v1266 = vpack.c.b16 %v906, %v902
    %v1267 = vpack.c.b16 %v907, %v903
    %v1268 = vpack.c.b16 %v908, %v904
    %v1269 = vpack.c.b16 %v909, %v905
    %v1270 = vpack.c.b16 %v914, %v910
    %v1271 = vpack.c.b16 %v915, %v911
    %v1272 = vpack.c.b16 %v916, %v912
    %v1273 = vpack.c.b16 %v917, %v913
    %v1274 = vpack.c.b16 %v922, %v918
    %v1275 = vpack.c.b16 %v923, %v919
    %v1276 = vpack.c.b16 %v924, %v920
    %v1277 = vpack.c.b16 %v925, %v921
    %v1278 = vpack.c.b16 %v930, %v926
    %v1279 = vpack.c.b16 %v931, %v927
    %v1280 = vpack.c.b16 %v932, %v928
    %v1281 = vpack.c.b16 %v933, %v929
    %v1282 = vpack.c.b16 %v938, %v934
    %v1283 = vpack.c.b16 %v939, %v935
    %v1284 = vpack.c.b16 %v940, %v936
    %v1285 = vpack.c.b16 %v941, %v937
    %v1286 = vpack.c.b16 %v946, %v942
    %v1287 = vpack.c.b16 %v947, %v943
    %v1288 = vpack.c.b16 %v948, %v944
    %v1289 = vpack.c.b16 %v949, %v945
    %v1290 = vpack.c.b16 %v954, %v950
    %v1291 = vpack.c.b16 %v955, %v951
    %v1292 = vpack.c.b16 %v956, %v952
    %v1293 = vpack.c.b16 %v957, %v953
    %v1294 = vpack.c.b16 %v962, %v958
    %v1295 = vpack.c.b16 %v963, %v959
    %v1296 = vpack.c.b16 %v964, %v960
    %v1297 = vpack.c.b16 %v965, %v961
    %v1298 = vpack.c.b16 %v970, %v966
    %v1299 = vpack.c.b16 %v971, %v967
    %v1300 = vpack.c.b16 %v972, %v968
    %v1301 = vpack.c.b16 %v973, %v969
    %v1302 = vpack.c.b16 %v978, %v974
    %v1303 = vpack.c.b16 %v979, %v975
    %v1304 = vpack.c.b16 %v980, %v976
    %v1305 = vpack.c.b16 %v981, %v977
    %v1306 = vpack.c.b16 %v986, %v982
    %v1307 = vpack.c.b16 %v987, %v983
    %v1308 = vpack.c.b16 %v988, %v984
    %v1309 = vpack.c.b16 %v989, %v985
    %v1310 = vpack.c.b16 %v994, %v990
    %v1311 = vpack.c.b16 %v995, %v991
    %v1312 = vpack.c.b16 %v996, %v992
    %v1313 = vpack.c.b16 %v997, %v993
    %v1314 = vpack.c.b16 %v1002, %v998
    %v1315 = vpack.c.b16 %v1003, %v999
    %v1316 = vpack.c.b16 %v1004, %v1000
    %v1317 = vpack.c.b16 %v1005, %v1001
    %v1318 = vpack.c.b16 %v1010, %v1006
    %v1319 = vpack.c.b16 %v1011, %v1007
    %v1320 = vpack.c.b16 %v1012, %v1008
    %v1321 = vpack.c.b16 %v1013, %v1009
    %v1322 = vpack.c.b16 %v1018, %v1014
    %v1323 = vpack.c.b16 %v1019, %v1015
    %v1324 = vpack.c.b16 %v1020, %v1016
    %v1325 = vpack.c.b16 %v1021, %v1017
    %v1326 = vpack.c.b16 %v1026, %v1022
    %v1327 = vpack.c.b16 %v1027, %v1023
    %v1328 = vpack.c.b16 %v1028, %v1024
    %v1329 = vpack.c.b16 %v1029, %v1025
    %v1330 = vpack.c.b16 %v1034, %v1030
    %v1331 = vpack.c.b16 %v1035, %v1031
    %v1332 = vpack.c.b16 %v1036, %v1032
    %v1333 = vpack.c.b16 %v1037, %v1033
    %v1334 = vpack.c.b16 %v1042, %v1038
    %v1335 = vpack.c.b16 %v1043, %v1039
    %v1336 = vpack.c.b16 %v1044, %v1040
    %v1337 = vpack.c.b16 %v1045, %v1041
    %v1338 = vpack.c.b16 %v1050, %v1046
    %v1339 = vpack.c.b16 %v1051, %v1047
    %v1340 = vpack.c.b16 %v1052, %v1048
    %v1341 = vpack.c.b16 %v1053, %v1049
    %v1342 = vpack.c.b16 %v1058, %v1054
    %v1343 = vpack.c.b16 %v1059, %v1055
    %v1344 = vpack.c.b16 %v1060, %v1056
    %v1345 = vpack.c.b16 %v1061, %v1057
    %v1346 = vpack.c.b16 %v1066, %v1062
    %v1347 = vpack.c.b16 %v1067, %v1063
    %v1348 = vpack.c.b16 %v1068, %v1064
    %v1349 = vpack.c.b16 %v1069, %v1065
    %v1350 = vpack.c.b16 %v1074, %v1070
    %v1351 = vpack.c.b16 %v1075, %v1071
    %v1352 = vpack.c.b16 %v1076, %v1072
    %v1353 = vpack.c.b16 %v1077, %v1073
    %v1354 = vpack.c.b16 %v1082, %v1078
    %v1355 = vpack.c.b16 %v1083, %v1079
    %v1356 = vpack.c.b16 %v1084, %v1080
    %v1357 = vpack.c.b16 %v1085, %v1081
    %v1358 = vpack.c.b16 %v1090, %v1086
    %v1359 = vpack.c.b16 %v1091, %v1087
    %v1360 = vpack.c.b16 %v1092, %v1088
    %v1361 = vpack.c.b16 %v1093, %v1089
    %v1362 = vpack.c.b16 %v1098, %v1094
    %v1363 = vpack.c.b16 %v1099, %v1095
    %v1364 = vpack.c.b16 %v1100, %v1096
    %v1365 = vpack.c.b16 %v1101, %v1097
    %v1366 = vpack.c.b16 %v1106, %v1102
    %v1367 = vpack.c.b16 %v1107, %v1103
    %v1368 = vpack.c.b16 %v1108, %v1104
    %v1369 = vpack.c.b16 %v1109, %v1105
    %v1370 = vpack.c.b16 %v1114, %v1110
    %v1371 = vpack.c.b16 %v1115, %v1111
    %v1372 = vpack.c.b16 %v1116, %v1112
    %v1373 = vpack.c.b16 %v1117, %v1113
    %1630 = vmatpush.bf16.msra.mxu0 %v1146
    %1631 = vmatpush.bf16.msra.mxu0 %v1142
    %1632 = vmatpush.bf16.msra.mxu0 %v1138
    %1633 = vmatpush.bf16.msra.mxu0 %v1134
    %1634 = vmatpush.bf16.msra.mxu0 %v1130
    %1635 = vmatpush.bf16.msra.mxu0 %v1126
    %1636 = vmatpush.bf16.msra.mxu0 %v1122
    %1637 = vmatpush.bf16.msra.mxu0 %v1118
    %1638 = vmatmul.bf16.gmra.mxu0 %v76
    %v1639 = vpop.f32.mrf.mxu0
    %v1640 = vadd.f32 %v342, %v1639
    %v1641 = vpop.f32.mrf.mxu0
    %v1642 = vadd.f32 %v342, %v1641
    %1643 = vdwg.mxu0
    %1644 = vmatpush.bf16.msra.mxu0 %v1178
    %1645 = vmatpush.bf16.msra.mxu0 %v1174
    %1646 = vmatpush.bf16.msra.mxu0 %v1170
    %1647 = vmatpush.bf16.msra.mxu0 %v1166
    %1648 = vmatpush.bf16.msra.mxu0 %v1162
    %1649 = vmatpush.bf16.msra.mxu0 %v1158
    %1650 = vmatpush.bf16.msra.mxu0 %v1154
    %1651 = vmatpush.bf16.msra.mxu0 %v1150
    %1652 = vmatmul.bf16.gmra.mxu0 %v77
    %v1653 = vpop.f32.mrf.mxu0
    %v1654 = vadd.f32 %v1640, %v1653
    %v1655 = vpop.f32.mrf.mxu0
    %v1656 = vadd.f32 %v1642, %v1655
    %1657 = vdwg.mxu0
    %1658 = vmatpush.bf16.msra.mxu0 %v1210
    %1659 = vmatpush.bf16.msra.mxu0 %v1206
    %1660 = vmatpush.bf16.msra.mxu0 %v1202
    %1661 = vmatpush.bf16.msra.mxu0 %v1198
    %1662 = vmatpush.bf16.msra.mxu0 %v1194
    %1663 = vmatpush.bf16.msra.mxu0 %v1190
    %1664 = vmatpush.bf16.msra.mxu0 %v1186
    %1665 = vmatpush.bf16.msra.mxu0 %v1182
    %1666 = vmatmul.bf16.gmra.mxu0 %v78
    %v1667 = vpop.f32.mrf.mxu0
    %v1668 = vadd.f32 %v1654, %v1667
    %v1669 = vpop.f32.mrf.mxu0
    %v1670 = vadd.f32 %v1656, %v1669
    %1671 = vdwg.mxu0
    %1672 = vmatpush.bf16.msra.mxu0 %v1242
    %1673 = vmatpush.bf16.msra.mxu0 %v1238
    %1674 = vmatpush.bf16.msra.mxu0 %v1234
    %1675 = vmatpush.bf16.msra.mxu0 %v1230
    %1676 = vmatpush.bf16.msra.mxu0 %v1226
    %1677 = vmatpush.bf16.msra.mxu0 %v1222
    %1678 = vmatpush.bf16.msra.mxu0 %v1218
    %1679 = vmatpush.bf16.msra.mxu0 %v1214
    %1680 = vmatmul.bf16.gmra.mxu0 %v79
    %v1681 = vpop.f32.mrf.mxu0
    %v1682 = vadd.f32 %v1668, %v1681
    %v1683 = vpop.f32.mrf.mxu0
    %v1684 = vadd.f32 %v1670, %v1683
    %1685 = vdwg.mxu0
    %1686 = vmatpush.bf16.msra.mxu0 %v1274
    %1687 = vmatpush.bf16.msra.mxu0 %v1270
    %1688 = vmatpush.bf16.msra.mxu0 %v1266
    %1689 = vmatpush.bf16.msra.mxu0 %v1262
    %1690 = vmatpush.bf16.msra.mxu0 %v1258
    %1691 = vmatpush.bf16.msra.mxu0 %v1254
    %1692 = vmatpush.bf16.msra.mxu0 %v1250
    %1693 = vmatpush.bf16.msra.mxu0 %v1246
    %1694 = vmatmul.bf16.gmra.mxu0 %v80
    %v1695 = vpop.f32.mrf.mxu0
    %v1696 = vadd.f32 %v1682, %v1695
    %v1697 = vpop.f32.mrf.mxu0
    %v1698 = vadd.f32 %v1684, %v1697
    %1699 = vdwg.mxu0
    %1700 = vmatpush.bf16.msra.mxu0 %v1306
    %1701 = vmatpush.bf16.msra.mxu0 %v1302
    %1702 = vmatpush.bf16.msra.mxu0 %v1298
    %1703 = vmatpush.bf16.msra.mxu0 %v1294
    %1704 = vmatpush.bf16.msra.mxu0 %v1290
    %1705 = vmatpush.bf16.msra.mxu0 %v1286
    %1706 = vmatpush.bf16.msra.mxu0 %v1282
    %1707 = vmatpush.bf16.msra.mxu0 %v1278
    %1708 = vmatmul.bf16.gmra.mxu0 %v81
    %v1709 = vpop.f32.mrf.mxu0
    %v1710 = vadd.f32 %v1696, %v1709
    %v1711 = vpop.f32.mrf.mxu0
    %v1712 = vadd.f32 %v1698, %v1711
    %1713 = vdwg.mxu0
    %1714 = vmatpush.bf16.msra.mxu0 %v1338
    %1715 = vmatpush.bf16.msra.mxu0 %v1334
    %1716 = vmatpush.bf16.msra.mxu0 %v1330
    %1717 = vmatpush.bf16.msra.mxu0 %v1326
    %1718 = vmatpush.bf16.msra.mxu0 %v1322
    %1719 = vmatpush.bf16.msra.mxu0 %v1318
    %1720 = vmatpush.bf16.msra.mxu0 %v1314
    %1721 = vmatpush.bf16.msra.mxu0 %v1310
    %1722 = vmatmul.bf16.gmra.mxu0 %v82
    %v1723 = vpop.f32.mrf.mxu0
    %v1724 = vadd.f32 %v1710, %v1723
    %v1725 = vpop.f32.mrf.mxu0
    %v1726 = vadd.f32 %v1712, %v1725
    %1727 = vdwg.mxu0
    %1728 = vmatpush.bf16.msra.mxu0 %v1370
    %1729 = vmatpush.bf16.msra.mxu0 %v1366
    %1730 = vmatpush.bf16.msra.mxu0 %v1362
    %1731 = vmatpush.bf16.msra.mxu0 %v1358
    %1732 = vmatpush.bf16.msra.mxu0 %v1354
    %1733 = vmatpush.bf16.msra.mxu0 %v1350
    %1734 = vmatpush.bf16.msra.mxu0 %v1346
    %1735 = vmatpush.bf16.msra.mxu0 %v1342
    %1736 = vmatmul.bf16.gmra.mxu0 %v83
    %v1737 = vpop.f32.mrf.mxu0
    %v1738 = vadd.f32 %v1724, %v1737
    %v1739 = vpop.f32.mrf.mxu0
    %v1740 = vadd.f32 %v1726, %v1739
    %1741 = vdwg.mxu0
    %1742 = vmatpush.bf16.msra.mxu0 %v1147
    %1743 = vmatpush.bf16.msra.mxu0 %v1143
    %1744 = vmatpush.bf16.msra.mxu0 %v1139
    %1745 = vmatpush.bf16.msra.mxu0 %v1135
    %1746 = vmatpush.bf16.msra.mxu0 %v1131
    %1747 = vmatpush.bf16.msra.mxu0 %v1127
    %1748 = vmatpush.bf16.msra.mxu0 %v1123
    %1749 = vmatpush.bf16.msra.mxu0 %v1119
    %1750 = vmatmul.bf16.gmra.mxu0 %v76
    %v1751 = vpop.f32.mrf.mxu0
    %v1752 = vadd.f32 %v343, %v1751
    %v1753 = vpop.f32.mrf.mxu0
    %v1754 = vadd.f32 %v343, %v1753
    %1755 = vdwg.mxu0
    %1756 = vmatpush.bf16.msra.mxu0 %v1179
    %1757 = vmatpush.bf16.msra.mxu0 %v1175
    %1758 = vmatpush.bf16.msra.mxu0 %v1171
    %1759 = vmatpush.bf16.msra.mxu0 %v1167
    %1760 = vmatpush.bf16.msra.mxu0 %v1163
    %1761 = vmatpush.bf16.msra.mxu0 %v1159
    %1762 = vmatpush.bf16.msra.mxu0 %v1155
    %1763 = vmatpush.bf16.msra.mxu0 %v1151
    %1764 = vmatmul.bf16.gmra.mxu0 %v77
    %v1765 = vpop.f32.mrf.mxu0
    %v1766 = vadd.f32 %v1752, %v1765
    %v1767 = vpop.f32.mrf.mxu0
    %v1768 = vadd.f32 %v1754, %v1767
    %1769 = vdwg.mxu0
    %1770 = vmatpush.bf16.msra.mxu0 %v1211
    %1771 = vmatpush.bf16.msra.mxu0 %v1207
    %1772 = vmatpush.bf16.msra.mxu0 %v1203
    %1773 = vmatpush.bf16.msra.mxu0 %v1199
    %1774 = vmatpush.bf16.msra.mxu0 %v1195
    %1775 = vmatpush.bf16.msra.mxu0 %v1191
    %1776 = vmatpush.bf16.msra.mxu0 %v1187
    %1777 = vmatpush.bf16.msra.mxu0 %v1183
    %1778 = vmatmul.bf16.gmra.mxu0 %v78
    %v1779 = vpop.f32.mrf.mxu0
    %v1780 = vadd.f32 %v1766, %v1779
    %v1781 = vpop.f32.mrf.mxu0
    %v1782 = vadd.f32 %v1768, %v1781
    %1783 = vdwg.mxu0
    %1784 = vmatpush.bf16.msra.mxu0 %v1243
    %1785 = vmatpush.bf16.msra.mxu0 %v1239
    %1786 = vmatpush.bf16.msra.mxu0 %v1235
    %1787 = vmatpush.bf16.msra.mxu0 %v1231
    %1788 = vmatpush.bf16.msra.mxu0 %v1227
    %1789 = vmatpush.bf16.msra.mxu0 %v1223
    %1790 = vmatpush.bf16.msra.mxu0 %v1219
    %1791 = vmatpush.bf16.msra.mxu0 %v1215
    %1792 = vmatmul.bf16.gmra.mxu0 %v79
    %v1793 = vpop.f32.mrf.mxu0
    %v1794 = vadd.f32 %v1780, %v1793
    %v1795 = vpop.f32.mrf.mxu0
    %v1796 = vadd.f32 %v1782, %v1795
    %1797 = vdwg.mxu0
    %1798 = vmatpush.bf16.msra.mxu0 %v1275
    %1799 = vmatpush.bf16.msra.mxu0 %v1271
    %1800 = vmatpush.bf16.msra.mxu0 %v1267
    %1801 = vmatpush.bf16.msra.mxu0 %v1263
    %1802 = vmatpush.bf16.msra.mxu0 %v1259
    %1803 = vmatpush.bf16.msra.mxu0 %v1255
    %1804 = vmatpush.bf16.msra.mxu0 %v1251
    %1805 = vmatpush.bf16.msra.mxu0 %v1247
    %1806 = vmatmul.bf16.gmra.mxu0 %v80
    %v1807 = vpop.f32.mrf.mxu0
    %v1808 = vadd.f32 %v1794, %v1807
    %v1809 = vpop.f32.mrf.mxu0
    %v1810 = vadd.f32 %v1796, %v1809
    %1811 = vdwg.mxu0
    %1812 = vmatpush.bf16.msra.mxu0 %v1307
    %1813 = vmatpush.bf16.msra.mxu0 %v1303
    %1814 = vmatpush.bf16.msra.mxu0 %v1299
    %1815 = vmatpush.bf16.msra.mxu0 %v1295
    %1816 = vmatpush.bf16.msra.mxu0 %v1291
    %1817 = vmatpush.bf16.msra.mxu0 %v1287
    %1818 = vmatpush.bf16.msra.mxu0 %v1283
    %1819 = vmatpush.bf16.msra.mxu0 %v1279
    %1820 = vmatmul.bf16.gmra.mxu0 %v81
    %v1821 = vpop.f32.mrf.mxu0
    %v1822 = vadd.f32 %v1808, %v1821
    %v1823 = vpop.f32.mrf.mxu0
    %v1824 = vadd.f32 %v1810, %v1823
    %1825 = vdwg.mxu0
    %1826 = vmatpush.bf16.msra.mxu0 %v1339
    %1827 = vmatpush.bf16.msra.mxu0 %v1335
    %1828 = vmatpush.bf16.msra.mxu0 %v1331
    %1829 = vmatpush.bf16.msra.mxu0 %v1327
    %1830 = vmatpush.bf16.msra.mxu0 %v1323
    %1831 = vmatpush.bf16.msra.mxu0 %v1319
    %1832 = vmatpush.bf16.msra.mxu0 %v1315
    %1833 = vmatpush.bf16.msra.mxu0 %v1311
    %1834 = vmatmul.bf16.gmra.mxu0 %v82
    %v1835 = vpop.f32.mrf.mxu0
    %v1836 = vadd.f32 %v1822, %v1835
    %v1837 = vpop.f32.mrf.mxu0
    %v1838 = vadd.f32 %v1824, %v1837
    %1839 = vdwg.mxu0
    %1840 = vmatpush.bf16.msra.mxu0 %v1371
    %1841 = vmatpush.bf16.msra.mxu0 %v1367
    %1842 = vmatpush.bf16.msra.mxu0 %v1363
    %1843 = vmatpush.bf16.msra.mxu0 %v1359
    %1844 = vmatpush.bf16.msra.mxu0 %v1355
    %1845 = vmatpush.bf16.msra.mxu0 %v1351
    %1846 = vmatpush.bf16.msra.mxu0 %v1347
    %1847 = vmatpush.bf16.msra.mxu0 %v1343
    %1848 = vmatmul.bf16.gmra.mxu0 %v83
    %v1849 = vpop.f32.mrf.mxu0
    %v1850 = vadd.f32 %v1836, %v1849
    %v1851 = vpop.f32.mrf.mxu0
    %v1852 = vadd.f32 %v1838, %v1851
    %1853 = vdwg.mxu0
    %1854 = vmatpush.bf16.msra.mxu0 %v1148
    %1855 = vmatpush.bf16.msra.mxu0 %v1144
    %1856 = vmatpush.bf16.msra.mxu0 %v1140
    %1857 = vmatpush.bf16.msra.mxu0 %v1136
    %1858 = vmatpush.bf16.msra.mxu0 %v1132
    %1859 = vmatpush.bf16.msra.mxu0 %v1128
    %1860 = vmatpush.bf16.msra.mxu0 %v1124
    %1861 = vmatpush.bf16.msra.mxu0 %v1120
    %1862 = vmatmul.bf16.gmra.mxu0 %v76
    %v1863 = vpop.f32.mrf.mxu0
    %v1864 = vadd.f32 %v344, %v1863
    %v1865 = vpop.f32.mrf.mxu0
    %v1866 = vadd.f32 %v344, %v1865
    %1867 = vdwg.mxu0
    %1868 = vmatpush.bf16.msra.mxu0 %v1180
    %1869 = vmatpush.bf16.msra.mxu0 %v1176
    %1870 = vmatpush.bf16.msra.mxu0 %v1172
    %1871 = vmatpush.bf16.msra.mxu0 %v1168
    %1872 = vmatpush.bf16.msra.mxu0 %v1164
    %1873 = vmatpush.bf16.msra.mxu0 %v1160
    %1874 = vmatpush.bf16.msra.mxu0 %v1156
    %1875 = vmatpush.bf16.msra.mxu0 %v1152
    %1876 = vmatmul.bf16.gmra.mxu0 %v77
    %v1877 = vpop.f32.mrf.mxu0
    %v1878 = vadd.f32 %v1864, %v1877
    %v1879 = vpop.f32.mrf.mxu0
    %v1880 = vadd.f32 %v1866, %v1879
    %1881 = vdwg.mxu0
    %1882 = vmatpush.bf16.msra.mxu0 %v1212
    %1883 = vmatpush.bf16.msra.mxu0 %v1208
    %1884 = vmatpush.bf16.msra.mxu0 %v1204
    %1885 = vmatpush.bf16.msra.mxu0 %v1200
    %1886 = vmatpush.bf16.msra.mxu0 %v1196
    %1887 = vmatpush.bf16.msra.mxu0 %v1192
    %1888 = vmatpush.bf16.msra.mxu0 %v1188
    %1889 = vmatpush.bf16.msra.mxu0 %v1184
    %1890 = vmatmul.bf16.gmra.mxu0 %v78
    %v1891 = vpop.f32.mrf.mxu0
    %v1892 = vadd.f32 %v1878, %v1891
    %v1893 = vpop.f32.mrf.mxu0
    %v1894 = vadd.f32 %v1880, %v1893
    %1895 = vdwg.mxu0
    %1896 = vmatpush.bf16.msra.mxu0 %v1244
    %1897 = vmatpush.bf16.msra.mxu0 %v1240
    %1898 = vmatpush.bf16.msra.mxu0 %v1236
    %1899 = vmatpush.bf16.msra.mxu0 %v1232
    %1900 = vmatpush.bf16.msra.mxu0 %v1228
    %1901 = vmatpush.bf16.msra.mxu0 %v1224
    %1902 = vmatpush.bf16.msra.mxu0 %v1220
    %1903 = vmatpush.bf16.msra.mxu0 %v1216
    %1904 = vmatmul.bf16.gmra.mxu0 %v79
    %v1905 = vpop.f32.mrf.mxu0
    %v1906 = vadd.f32 %v1892, %v1905
    %v1907 = vpop.f32.mrf.mxu0
    %v1908 = vadd.f32 %v1894, %v1907
    %1909 = vdwg.mxu0
    %1910 = vmatpush.bf16.msra.mxu0 %v1276
    %1911 = vmatpush.bf16.msra.mxu0 %v1272
    %1912 = vmatpush.bf16.msra.mxu0 %v1268
    %1913 = vmatpush.bf16.msra.mxu0 %v1264
    %1914 = vmatpush.bf16.msra.mxu0 %v1260
    %1915 = vmatpush.bf16.msra.mxu0 %v1256
    %1916 = vmatpush.bf16.msra.mxu0 %v1252
    %1917 = vmatpush.bf16.msra.mxu0 %v1248
    %1918 = vmatmul.bf16.gmra.mxu0 %v80
    %v1919 = vpop.f32.mrf.mxu0
    %v1920 = vadd.f32 %v1906, %v1919
    %v1921 = vpop.f32.mrf.mxu0
    %v1922 = vadd.f32 %v1908, %v1921
    %1923 = vdwg.mxu0
    %1924 = vmatpush.bf16.msra.mxu0 %v1308
    %1925 = vmatpush.bf16.msra.mxu0 %v1304
    %1926 = vmatpush.bf16.msra.mxu0 %v1300
    %1927 = vmatpush.bf16.msra.mxu0 %v1296
    %1928 = vmatpush.bf16.msra.mxu0 %v1292
    %1929 = vmatpush.bf16.msra.mxu0 %v1288
    %1930 = vmatpush.bf16.msra.mxu0 %v1284
    %1931 = vmatpush.bf16.msra.mxu0 %v1280
    %1932 = vmatmul.bf16.gmra.mxu0 %v81
    %v1933 = vpop.f32.mrf.mxu0
    %v1934 = vadd.f32 %v1920, %v1933
    %v1935 = vpop.f32.mrf.mxu0
    %v1936 = vadd.f32 %v1922, %v1935
    %1937 = vdwg.mxu0
    %1938 = vmatpush.bf16.msra.mxu0 %v1340
    %1939 = vmatpush.bf16.msra.mxu0 %v1336
    %1940 = vmatpush.bf16.msra.mxu0 %v1332
    %1941 = vmatpush.bf16.msra.mxu0 %v1328
    %1942 = vmatpush.bf16.msra.mxu0 %v1324
    %1943 = vmatpush.bf16.msra.mxu0 %v1320
    %1944 = vmatpush.bf16.msra.mxu0 %v1316
    %1945 = vmatpush.bf16.msra.mxu0 %v1312
    %1946 = vmatmul.bf16.gmra.mxu0 %v82
    %v1947 = vpop.f32.mrf.mxu0
    %v1948 = vadd.f32 %v1934, %v1947
    %v1949 = vpop.f32.mrf.mxu0
    %v1950 = vadd.f32 %v1936, %v1949
    %1951 = vdwg.mxu0
    %1952 = vmatpush.bf16.msra.mxu0 %v1372
    %1953 = vmatpush.bf16.msra.mxu0 %v1368
    %1954 = vmatpush.bf16.msra.mxu0 %v1364
    %1955 = vmatpush.bf16.msra.mxu0 %v1360
    %1956 = vmatpush.bf16.msra.mxu0 %v1356
    %1957 = vmatpush.bf16.msra.mxu0 %v1352
    %1958 = vmatpush.bf16.msra.mxu0 %v1348
    %1959 = vmatpush.bf16.msra.mxu0 %v1344
    %1960 = vmatmul.bf16.gmra.mxu0 %v83
    %v1961 = vpop.f32.mrf.mxu0
    %v1962 = vadd.f32 %v1948, %v1961
    %v1963 = vpop.f32.mrf.mxu0
    %v1964 = vadd.f32 %v1950, %v1963
    %1965 = vdwg.mxu0
    %1966 = vmatpush.bf16.msra.mxu0 %v1149
    %1967 = vmatpush.bf16.msra.mxu0 %v1145
    %1968 = vmatpush.bf16.msra.mxu0 %v1141
    %1969 = vmatpush.bf16.msra.mxu0 %v1137
    %1970 = vmatpush.bf16.msra.mxu0 %v1133
    %1971 = vmatpush.bf16.msra.mxu0 %v1129
    %1972 = vmatpush.bf16.msra.mxu0 %v1125
    %1973 = vmatpush.bf16.msra.mxu0 %v1121
    %1974 = vmatmul.bf16.gmra.mxu0 %v76
    %v1975 = vpop.f32.mrf.mxu0
    %v1976 = vadd.f32 %v345, %v1975
    %v1977 = vpop.f32.mrf.mxu0
    %v1978 = vadd.f32 %v345, %v1977
    %1979 = vdwg.mxu0
    %1980 = vmatpush.bf16.msra.mxu0 %v1181
    %1981 = vmatpush.bf16.msra.mxu0 %v1177
    %1982 = vmatpush.bf16.msra.mxu0 %v1173
    %1983 = vmatpush.bf16.msra.mxu0 %v1169
    %1984 = vmatpush.bf16.msra.mxu0 %v1165
    %1985 = vmatpush.bf16.msra.mxu0 %v1161
    %1986 = vmatpush.bf16.msra.mxu0 %v1157
    %1987 = vmatpush.bf16.msra.mxu0 %v1153
    %1988 = vmatmul.bf16.gmra.mxu0 %v77
    %v1989 = vpop.f32.mrf.mxu0
    %v1990 = vadd.f32 %v1976, %v1989
    %v1991 = vpop.f32.mrf.mxu0
    %v1992 = vadd.f32 %v1978, %v1991
    %1993 = vdwg.mxu0
    %1994 = vmatpush.bf16.msra.mxu0 %v1213
    %1995 = vmatpush.bf16.msra.mxu0 %v1209
    %1996 = vmatpush.bf16.msra.mxu0 %v1205
    %1997 = vmatpush.bf16.msra.mxu0 %v1201
    %1998 = vmatpush.bf16.msra.mxu0 %v1197
    %1999 = vmatpush.bf16.msra.mxu0 %v1193
    %2000 = vmatpush.bf16.msra.mxu0 %v1189
    %2001 = vmatpush.bf16.msra.mxu0 %v1185
    %2002 = vmatmul.bf16.gmra.mxu0 %v78
    %v2003 = vpop.f32.mrf.mxu0
    %v2004 = vadd.f32 %v1990, %v2003
    %v2005 = vpop.f32.mrf.mxu0
    %v2006 = vadd.f32 %v1992, %v2005
    %2007 = vdwg.mxu0
    %2008 = vmatpush.bf16.msra.mxu0 %v1245
    %2009 = vmatpush.bf16.msra.mxu0 %v1241
    %2010 = vmatpush.bf16.msra.mxu0 %v1237
    %2011 = vmatpush.bf16.msra.mxu0 %v1233
    %2012 = vmatpush.bf16.msra.mxu0 %v1229
    %2013 = vmatpush.bf16.msra.mxu0 %v1225
    %2014 = vmatpush.bf16.msra.mxu0 %v1221
    %2015 = vmatpush.bf16.msra.mxu0 %v1217
    %2016 = vmatmul.bf16.gmra.mxu0 %v79
    %v2017 = vpop.f32.mrf.mxu0
    %v2018 = vadd.f32 %v2004, %v2017
    %v2019 = vpop.f32.mrf.mxu0
    %v2020 = vadd.f32 %v2006, %v2019
    %2021 = vdwg.mxu0
    %2022 = vmatpush.bf16.msra.mxu0 %v1277
    %2023 = vmatpush.bf16.msra.mxu0 %v1273
    %2024 = vmatpush.bf16.msra.mxu0 %v1269
    %2025 = vmatpush.bf16.msra.mxu0 %v1265
    %2026 = vmatpush.bf16.msra.mxu0 %v1261
    %2027 = vmatpush.bf16.msra.mxu0 %v1257
    %2028 = vmatpush.bf16.msra.mxu0 %v1253
    %2029 = vmatpush.bf16.msra.mxu0 %v1249
    %2030 = vmatmul.bf16.gmra.mxu0 %v80
    %v2031 = vpop.f32.mrf.mxu0
    %v2032 = vadd.f32 %v2018, %v2031
    %v2033 = vpop.f32.mrf.mxu0
    %v2034 = vadd.f32 %v2020, %v2033
    %2035 = vdwg.mxu0
    %2036 = vmatpush.bf16.msra.mxu0 %v1309
    %2037 = vmatpush.bf16.msra.mxu0 %v1305
    %2038 = vmatpush.bf16.msra.mxu0 %v1301
    %2039 = vmatpush.bf16.msra.mxu0 %v1297
    %2040 = vmatpush.bf16.msra.mxu0 %v1293
    %2041 = vmatpush.bf16.msra.mxu0 %v1289
    %2042 = vmatpush.bf16.msra.mxu0 %v1285
    %2043 = vmatpush.bf16.msra.mxu0 %v1281
    %2044 = vmatmul.bf16.gmra.mxu0 %v81
    %v2045 = vpop.f32.mrf.mxu0
    %v2046 = vadd.f32 %v2032, %v2045
    %v2047 = vpop.f32.mrf.mxu0
    %v2048 = vadd.f32 %v2034, %v2047
    %2049 = vdwg.mxu0
    %2050 = vmatpush.bf16.msra.mxu0 %v1341
    %2051 = vmatpush.bf16.msra.mxu0 %v1337
    %2052 = vmatpush.bf16.msra.mxu0 %v1333
    %2053 = vmatpush.bf16.msra.mxu0 %v1329
    %2054 = vmatpush.bf16.msra.mxu0 %v1325
    %2055 = vmatpush.bf16.msra.mxu0 %v1321
    %2056 = vmatpush.bf16.msra.mxu0 %v1317
    %2057 = vmatpush.bf16.msra.mxu0 %v1313
    %2058 = vmatmul.bf16.gmra.mxu0 %v82
    %v2059 = vpop.f32.mrf.mxu0
    %v2060 = vadd.f32 %v2046, %v2059
    %v2061 = vpop.f32.mrf.mxu0
    %v2062 = vadd.f32 %v2048, %v2061
    %2063 = vdwg.mxu0
    %2064 = vmatpush.bf16.msra.mxu0 %v1373
    %2065 = vmatpush.bf16.msra.mxu0 %v1369
    %2066 = vmatpush.bf16.msra.mxu0 %v1365
    %2067 = vmatpush.bf16.msra.mxu0 %v1361
    %2068 = vmatpush.bf16.msra.mxu0 %v1357
    %2069 = vmatpush.bf16.msra.mxu0 %v1353
    %2070 = vmatpush.bf16.msra.mxu0 %v1349
    %2071 = vmatpush.bf16.msra.mxu0 %v1345
    %2072 = vmatmul.bf16.gmra.mxu0 %v83
    %v2073 = vpop.f32.mrf.mxu0
    %v2074 = vadd.f32 %v2060, %v2073
    %v2075 = vpop.f32.mrf.mxu0
    %v2076 = vadd.f32 %v2062, %v2075
    %2077 = vdwg.mxu0
    %v2078 = vmul.f32 %v1738, 0.2
    %v2079 = vmul.f32 %v1850, 0.2
    %v2080 = vmul.f32 %v1962, 0.2
    %v2081 = vmul.f32 %v2074, 0.2
    %v2082 = vmul.f32 %v1740, 0.2
    %v2083 = vmul.f32 %v1852, 0.2
    %v2084 = vmul.f32 %v1964, 0.2
    %v2085 = vmul.f32 %v2076, 0.2
    %v2086 = vmax.f32 %v1738, %v2078
    %v2087 = vmax.f32 %v1850, %v2079
    %v2088 = vmax.f32 %v1962, %v2080
    %v2089 = vmax.f32 %v2074, %v2081
    %v2090 = vmax.f32 %v1740, %v2082
    %v2091 = vmax.f32 %v1852, %v2083
    %v2092 = vmax.f32 %v1964, %v2084
    %v2093 = vmax.f32 %v2076, %v2085
    %v2094 = vpack.c.bf16 %v2090, %v2086
    %v2095 = vpack.c.bf16 %v2091, %v2087
    %v2096 = vpack.c.bf16 %v2092, %v2088
    %v2097 = vpack.c.bf16 %v2093, %v2089
    %v2098 = vld [vmem:[#allocation5] sm:$0xff]
    %v2099 = vld [vmem:[#allocation5 + $0x8] sm:$0xff]
    %v2100 = vld [vmem:[#allocation5 + $0x10] sm:$0xff]
    %v2101 = vld [vmem:[#allocation5 + $0x18] sm:$0xff]
    %v2102 = vld [vmem:[#allocation5 + $0x20] sm:$0xff]
    %v2103 = vld [vmem:[#allocation5 + $0x28] sm:$0xff]
    %v2104 = vld [vmem:[#allocation5 + $0x30] sm:$0xff]
    %v2105 = vld [vmem:[#allocation5 + $0x38] sm:$0xff]
    %v2106 = vld [vmem:[#allocation5 + $0x40] sm:$0xff]
    %v2107 = vld [vmem:[#allocation5 + $0x48] sm:$0xff]
    %v2108 = vld [vmem:[#allocation5 + $0x50] sm:$0xff]
    %v2109 = vld [vmem:[#allocation5 + $0x58] sm:$0xff]
    %v2110 = vld [vmem:[#allocation5 + $0x60] sm:$0xff]
    %v2111 = vld [vmem:[#allocation5 + $0x68] sm:$0xff]
    %v2112 = vld [vmem:[#allocation5 + $0x70] sm:$0xff]
    %v2113 = vld [vmem:[#allocation5 + $0x78] sm:$0xff]
    %v2114 = vld [vmem:[#allocation5 + $0x80] sm:$0xff]
    %v2115 = vld [vmem:[#allocation5 + $0x88] sm:$0xff]
    %v2116 = vld [vmem:[#allocation5 + $0x90] sm:$0xff]
    %v2117 = vld [vmem:[#allocation5 + $0x98] sm:$0xff]
    %v2118 = vld [vmem:[#allocation5 + $0xa0] sm:$0xff]
    %v2119 = vld [vmem:[#allocation5 + $0xa8] sm:$0xff]
    %v2120 = vld [vmem:[#allocation5 + $0xb0] sm:$0xff]
    %v2121 = vld [vmem:[#allocation5 + $0xb8] sm:$0xff]
    %v2122 = vld [vmem:[#allocation5 + $0xc0] sm:$0xff]
    %v2123 = vld [vmem:[#allocation5 + $0xc8] sm:$0xff]
    %v2124 = vld [vmem:[#allocation5 + $0xd0] sm:$0xff]
    %v2125 = vld [vmem:[#allocation5 + $0xd8] sm:$0xff]
    %v2126 = vld [vmem:[#allocation5 + $0xe0] sm:$0xff]
    %v2127 = vld [vmem:[#allocation5 + $0xe8] sm:$0xff]
    %v2128 = vld [vmem:[#allocation5 + $0xf0] sm:$0xff]
    %v2129 = vld [vmem:[#allocation5 + $0xf8] sm:$0xff]
    %v2130 = vld [vmem:[#allocation5 + $0x100] sm:$0xff]
    %v2131 = vld [vmem:[#allocation5 + $0x108] sm:$0xff]
    %v2132 = vld [vmem:[#allocation5 + $0x110] sm:$0xff]
    %v2133 = vld [vmem:[#allocation5 + $0x118] sm:$0xff]
    %v2134 = vld [vmem:[#allocation5 + $0x120] sm:$0xff]
    %v2135 = vld [vmem:[#allocation5 + $0x128] sm:$0xff]
    %v2136 = vld [vmem:[#allocation5 + $0x130] sm:$0xff]
    %v2137 = vld [vmem:[#allocation5 + $0x138] sm:$0xff]
    %v2138 = vld [vmem:[#allocation5 + $0x140] sm:$0xff]
    %v2139 = vld [vmem:[#allocation5 + $0x148] sm:$0xff]
    %v2140 = vld [vmem:[#allocation5 + $0x150] sm:$0xff]
    %v2141 = vld [vmem:[#allocation5 + $0x158] sm:$0xff]
    %v2142 = vld [vmem:[#allocation5 + $0x160] sm:$0xff]
    %v2143 = vld [vmem:[#allocation5 + $0x168] sm:$0xff]
    %v2144 = vld [vmem:[#allocation5 + $0x170] sm:$0xff]
    %v2145 = vld [vmem:[#allocation5 + $0x178] sm:$0xff]
    %v2146 = vld [vmem:[#allocation5 + $0x180] sm:$0xff]
    %v2147 = vld [vmem:[#allocation5 + $0x188] sm:$0xff]
    %v2148 = vld [vmem:[#allocation5 + $0x190] sm:$0xff]
    %v2149 = vld [vmem:[#allocation5 + $0x198] sm:$0xff]
    %v2150 = vld [vmem:[#allocation5 + $0x1a0] sm:$0xff]
    %v2151 = vld [vmem:[#allocation5 + $0x1a8] sm:$0xff]
    %v2152 = vld [vmem:[#allocation5 + $0x1b0] sm:$0xff]
    %v2153 = vld [vmem:[#allocation5 + $0x1b8] sm:$0xff]
    %v2154 = vld [vmem:[#allocation5 + $0x1c0] sm:$0xff]
    %v2155 = vld [vmem:[#allocation5 + $0x1c8] sm:$0xff]
    %v2156 = vld [vmem:[#allocation5 + $0x1d0] sm:$0xff]
    %v2157 = vld [vmem:[#allocation5 + $0x1d8] sm:$0xff]
    %v2158 = vld [vmem:[#allocation5 + $0x1e0] sm:$0xff]
    %v2159 = vld [vmem:[#allocation5 + $0x1e8] sm:$0xff]
    %v2160 = vld [vmem:[#allocation5 + $0x1f0] sm:$0xff]
    %v2161 = vld [vmem:[#allocation5 + $0x1f8] sm:$0xff]
    %v2162 = vld [vmem:[%s4] sm:$0x3]
    %v2164 = vperm.slane %v2162, 0
    %v2165 = vperm.slane %v2162, 1
    %v2232 = vunpack.c.l.b16 %v2098
    %v2233 = vunpack.c.h.b16 %v2098
    %v2234 = vunpack.c.l.b16 %v2099
    %v2235 = vunpack.c.h.b16 %v2099
    %v2236 = vunpack.c.l.b16 %v2100
    %v2237 = vunpack.c.h.b16 %v2100
    %v2238 = vunpack.c.l.b16 %v2101
    %v2239 = vunpack.c.h.b16 %v2101
    %v2240 = vunpack.c.l.b16 %v2102
    %v2241 = vunpack.c.h.b16 %v2102
    %v2242 = vunpack.c.l.b16 %v2103
    %v2243 = vunpack.c.h.b16 %v2103
    %v2244 = vunpack.c.l.b16 %v2104
    %v2245 = vunpack.c.h.b16 %v2104
    %v2246 = vunpack.c.l.b16 %v2105
    %v2247 = vunpack.c.h.b16 %v2105
    %v2248 = vunpack.c.l.b16 %v2106
    %v2249 = vunpack.c.h.b16 %v2106
    %v2250 = vunpack.c.l.b16 %v2107
    %v2251 = vunpack.c.h.b16 %v2107
    %v2252 = vunpack.c.l.b16 %v2108
    %v2253 = vunpack.c.h.b16 %v2108
    %v2254 = vunpack.c.l.b16 %v2109
    %v2255 = vunpack.c.h.b16 %v2109
    %v2256 = vunpack.c.l.b16 %v2110
    %v2257 = vunpack.c.h.b16 %v2110
    %v2258 = vunpack.c.l.b16 %v2111
    %v2259 = vunpack.c.h.b16 %v2111
    %v2260 = vunpack.c.l.b16 %v2112
    %v2261 = vunpack.c.h.b16 %v2112
    %v2262 = vunpack.c.l.b16 %v2113
    %v2263 = vunpack.c.h.b16 %v2113
    %v2264 = vunpack.c.l.b16 %v2114
    %v2265 = vunpack.c.h.b16 %v2114
    %v2266 = vunpack.c.l.b16 %v2115
    %v2267 = vunpack.c.h.b16 %v2115
    %v2268 = vunpack.c.l.b16 %v2116
    %v2269 = vunpack.c.h.b16 %v2116
    %v2270 = vunpack.c.l.b16 %v2117
    %v2271 = vunpack.c.h.b16 %v2117
    %v2272 = vunpack.c.l.b16 %v2118
    %v2273 = vunpack.c.h.b16 %v2118
    %v2274 = vunpack.c.l.b16 %v2119
    %v2275 = vunpack.c.h.b16 %v2119
    %v2276 = vunpack.c.l.b16 %v2120
    %v2277 = vunpack.c.h.b16 %v2120
    %v2278 = vunpack.c.l.b16 %v2121
    %v2279 = vunpack.c.h.b16 %v2121
    %v2280 = vunpack.c.l.b16 %v2122
    %v2281 = vunpack.c.h.b16 %v2122
    %v2282 = vunpack.c.l.b16 %v2123
    %v2283 = vunpack.c.h.b16 %v2123
    %v2284 = vunpack.c.l.b16 %v2124
    %v2285 = vunpack.c.h.b16 %v2124
    %v2286 = vunpack.c.l.b16 %v2125
    %v2287 = vunpack.c.h.b16 %v2125
    %v2288 = vunpack.c.l.b16 %v2126
    %v2289 = vunpack.c.h.b16 %v2126
    %v2290 = vunpack.c.l.b16 %v2127
    %v2291 = vunpack.c.h.b16 %v2127
    %v2292 = vunpack.c.l.b16 %v2128
    %v2293 = vunpack.c.h.b16 %v2128
    %v2294 = vunpack.c.l.b16 %v2129
    %v2295 = vunpack.c.h.b16 %v2129
    %v2296 = vunpack.c.l.b16 %v2130
    %v2297 = vunpack.c.h.b16 %v2130
    %v2298 = vunpack.c.l.b16 %v2131
    %v2299 = vunpack.c.h.b16 %v2131
    %v2300 = vunpack.c.l.b16 %v2132
    %v2301 = vunpack.c.h.b16 %v2132
    %v2302 = vunpack.c.l.b16 %v2133
    %v2303 = vunpack.c.h.b16 %v2133
    %v2304 = vunpack.c.l.b16 %v2134
    %v2305 = vunpack.c.h.b16 %v2134
    %v2306 = vunpack.c.l.b16 %v2135
    %v2307 = vunpack.c.h.b16 %v2135
    %v2308 = vunpack.c.l.b16 %v2136
    %v2309 = vunpack.c.h.b16 %v2136
    %v2310 = vunpack.c.l.b16 %v2137
    %v2311 = vunpack.c.h.b16 %v2137
    %v2312 = vunpack.c.l.b16 %v2138
    %v2313 = vunpack.c.h.b16 %v2138
    %v2314 = vunpack.c.l.b16 %v2139
    %v2315 = vunpack.c.h.b16 %v2139
    %v2316 = vunpack.c.l.b16 %v2140
    %v2317 = vunpack.c.h.b16 %v2140
    %v2318 = vunpack.c.l.b16 %v2141
    %v2319 = vunpack.c.h.b16 %v2141
    %v2320 = vunpack.c.l.b16 %v2142
    %v2321 = vunpack.c.h.b16 %v2142
    %v2322 = vunpack.c.l.b16 %v2143
    %v2323 = vunpack.c.h.b16 %v2143
    %v2324 = vunpack.c.l.b16 %v2144
    %v2325 = vunpack.c.h.b16 %v2144
    %v2326 = vunpack.c.l.b16 %v2145
    %v2327 = vunpack.c.h.b16 %v2145
    %v2328 = vunpack.c.l.b16 %v2146
    %v2329 = vunpack.c.h.b16 %v2146
    %v2330 = vunpack.c.l.b16 %v2147
    %v2331 = vunpack.c.h.b16 %v2147
    %v2332 = vunpack.c.l.b16 %v2148
    %v2333 = vunpack.c.h.b16 %v2148
    %v2334 = vunpack.c.l.b16 %v2149
    %v2335 = vunpack.c.h.b16 %v2149
    %v2336 = vunpack.c.l.b16 %v2150
    %v2337 = vunpack.c.h.b16 %v2150
    %v2338 = vunpack.c.l.b16 %v2151
    %v2339 = vunpack.c.h.b16 %v2151
    %v2340 = vunpack.c.l.b16 %v2152
    %v2341 = vunpack.c.h.b16 %v2152
    %v2342 = vunpack.c.l.b16 %v2153
    %v2343 = vunpack.c.h.b16 %v2153
    %v2344 = vunpack.c.l.b16 %v2154
    %v2345 = vunpack.c.h.b16 %v2154
    %v2346 = vunpack.c.l.b16 %v2155
    %v2347 = vunpack.c.h.b16 %v2155
    %v2348 = vunpack.c.l.b16 %v2156
    %v2349 = vunpack.c.h.b16 %v2156
    %v2350 = vunpack.c.l.b16 %v2157
    %v2351 = vunpack.c.h.b16 %v2157
    %v2352 = vunpack.c.l.b16 %v2158
    %v2353 = vunpack.c.h.b16 %v2158
    %v2354 = vunpack.c.l.b16 %v2159
    %v2355 = vunpack.c.h.b16 %v2159
    %v2356 = vunpack.c.l.b16 %v2160
    %v2357 = vunpack.c.h.b16 %v2160
    %v2358 = vunpack.c.l.b16 %v2161
    %v2359 = vunpack.c.h.b16 %v2161
    %v2360 = vpack.c.b16 %v2234, %v2232
    %v2361 = vpack.c.b16 %v2235, %v2233
    %v2362 = vpack.c.b16 %v2238, %v2236
    %v2363 = vpack.c.b16 %v2239, %v2237
    %v2364 = vpack.c.b16 %v2242, %v2240
    %v2365 = vpack.c.b16 %v2243, %v2241
    %v2366 = vpack.c.b16 %v2246, %v2244
    %v2367 = vpack.c.b16 %v2247, %v2245
    %v2368 = vpack.c.b16 %v2250, %v2248
    %v2369 = vpack.c.b16 %v2251, %v2249
    %v2370 = vpack.c.b16 %v2254, %v2252
    %v2371 = vpack.c.b16 %v2255, %v2253
    %v2372 = vpack.c.b16 %v2258, %v2256
    %v2373 = vpack.c.b16 %v2259, %v2257
    %v2374 = vpack.c.b16 %v2262, %v2260
    %v2375 = vpack.c.b16 %v2263, %v2261
    %v2376 = vpack.c.b16 %v2266, %v2264
    %v2377 = vpack.c.b16 %v2267, %v2265
    %v2378 = vpack.c.b16 %v2270, %v2268
    %v2379 = vpack.c.b16 %v2271, %v2269
    %v2380 = vpack.c.b16 %v2274, %v2272
    %v2381 = vpack.c.b16 %v2275, %v2273
    %v2382 = vpack.c.b16 %v2278, %v2276
    %v2383 = vpack.c.b16 %v2279, %v2277
    %v2384 = vpack.c.b16 %v2282, %v2280
    %v2385 = vpack.c.b16 %v2283, %v2281
    %v2386 = vpack.c.b16 %v2286, %v2284
    %v2387 = vpack.c.b16 %v2287, %v2285
    %v2388 = vpack.c.b16 %v2290, %v2288
    %v2389 = vpack.c.b16 %v2291, %v2289
    %v2390 = vpack.c.b16 %v2294, %v2292
    %v2391 = vpack.c.b16 %v2295, %v2293
    %v2392 = vpack.c.b16 %v2298, %v2296
    %v2393 = vpack.c.b16 %v2299, %v2297
    %v2394 = vpack.c.b16 %v2302, %v2300
    %v2395 = vpack.c.b16 %v2303, %v2301
    %v2396 = vpack.c.b16 %v2306, %v2304
    %v2397 = vpack.c.b16 %v2307, %v2305
    %v2398 = vpack.c.b16 %v2310, %v2308
    %v2399 = vpack.c.b16 %v2311, %v2309
    %v2400 = vpack.c.b16 %v2314, %v2312
    %v2401 = vpack.c.b16 %v2315, %v2313
    %v2402 = vpack.c.b16 %v2318, %v2316
    %v2403 = vpack.c.b16 %v2319, %v2317
    %v2404 = vpack.c.b16 %v2322, %v2320
    %v2405 = vpack.c.b16 %v2323, %v2321
    %v2406 = vpack.c.b16 %v2326, %v2324
    %v2407 = vpack.c.b16 %v2327, %v2325
    %v2408 = vpack.c.b16 %v2330, %v2328
    %v2409 = vpack.c.b16 %v2331, %v2329
    %v2410 = vpack.c.b16 %v2334, %v2332
    %v2411 = vpack.c.b16 %v2335, %v2333
    %v2412 = vpack.c.b16 %v2338, %v2336
    %v2413 = vpack.c.b16 %v2339, %v2337
    %v2414 = vpack.c.b16 %v2342, %v2340
    %v2415 = vpack.c.b16 %v2343, %v2341
    %v2416 = vpack.c.b16 %v2346, %v2344
    %v2417 = vpack.c.b16 %v2347, %v2345
    %v2418 = vpack.c.b16 %v2350, %v2348
    %v2419 = vpack.c.b16 %v2351, %v2349
    %v2420 = vpack.c.b16 %v2354, %v2352
    %v2421 = vpack.c.b16 %v2355, %v2353
    %v2422 = vpack.c.b16 %v2358, %v2356
    %v2423 = vpack.c.b16 %v2359, %v2357
    %2488 = vmatpush.bf16.msra.mxu0 %v2374
    %2489 = vmatpush.bf16.msra.mxu0 %v2372
    %2490 = vmatpush.bf16.msra.mxu0 %v2370
    %2491 = vmatpush.bf16.msra.mxu0 %v2368
    %2492 = vmatpush.bf16.msra.mxu0 %v2366
    %2493 = vmatpush.bf16.msra.mxu0 %v2364
    %2494 = vmatpush.bf16.msra.mxu0 %v2362
    %2495 = vmatpush.bf16.msra.mxu0 %v2360
    %2496 = vmatmul.bf16.gmra.mxu0 %v2094
    %v2497 = vpop.f32.mrf.mxu0
    %v2498 = vadd.f32 %v2164, %v2497
    %v2499 = vpop.f32.mrf.mxu0
    %v2500 = vadd.f32 %v2164, %v2499
    %2501 = vdwg.mxu0
    %2502 = vmatpush.bf16.msra.mxu0 %v2390
    %2503 = vmatpush.bf16.msra.mxu0 %v2388
    %2504 = vmatpush.bf16.msra.mxu0 %v2386
    %2505 = vmatpush.bf16.msra.mxu0 %v2384
    %2506 = vmatpush.bf16.msra.mxu0 %v2382
    %2507 = vmatpush.bf16.msra.mxu0 %v2380
    %2508 = vmatpush.bf16.msra.mxu0 %v2378
    %2509 = vmatpush.bf16.msra.mxu0 %v2376
    %2510 = vmatmul.bf16.gmra.mxu0 %v2095
    %v2511 = vpop.f32.mrf.mxu0
    %v2512 = vadd.f32 %v2498, %v2511
    %v2513 = vpop.f32.mrf.mxu0
    %v2514 = vadd.f32 %v2500, %v2513
    %2515 = vdwg.mxu0
    %2516 = vmatpush.bf16.msra.mxu0 %v2406
    %2517 = vmatpush.bf16.msra.mxu0 %v2404
    %2518 = vmatpush.bf16.msra.mxu0 %v2402
    %2519 = vmatpush.bf16.msra.mxu0 %v2400
    %2520 = vmatpush.bf16.msra.mxu0 %v2398
    %2521 = vmatpush.bf16.msra.mxu0 %v2396
    %2522 = vmatpush.bf16.msra.mxu0 %v2394
    %2523 = vmatpush.bf16.msra.mxu0 %v2392
    %2524 = vmatmul.bf16.gmra.mxu0 %v2096
    %v2525 = vpop.f32.mrf.mxu0
    %v2526 = vadd.f32 %v2512, %v2525
    %v2527 = vpop.f32.mrf.mxu0
    %v2528 = vadd.f32 %v2514, %v2527
    %2529 = vdwg.mxu0
    %2530 = vmatpush.bf16.msra.mxu0 %v2422
    %2531 = vmatpush.bf16.msra.mxu0 %v2420
    %2532 = vmatpush.bf16.msra.mxu0 %v2418
    %2533 = vmatpush.bf16.msra.mxu0 %v2416
    %2534 = vmatpush.bf16.msra.mxu0 %v2414
    %2535 = vmatpush.bf16.msra.mxu0 %v2412
    %2536 = vmatpush.bf16.msra.mxu0 %v2410
    %2537 = vmatpush.bf16.msra.mxu0 %v2408
    %2538 = vmatmul.bf16.gmra.mxu0 %v2097
    %v2539 = vpop.f32.mrf.mxu0
    %v2540 = vadd.f32 %v2526, %v2539
    %v2541 = vpop.f32.mrf.mxu0
    %v2542 = vadd.f32 %v2528, %v2541
    %2543 = vdwg.mxu0
    %2544 = vmatpush.bf16.msra.mxu0 %v2375
    %2545 = vmatpush.bf16.msra.mxu0 %v2373
    %2546 = vmatpush.bf16.msra.mxu0 %v2371
    %2547 = vmatpush.bf16.msra.mxu0 %v2369
    %2548 = vmatpush.bf16.msra.mxu0 %v2367
    %2549 = vmatpush.bf16.msra.mxu0 %v2365
    %2550 = vmatpush.bf16.msra.mxu0 %v2363
    %2551 = vmatpush.bf16.msra.mxu0 %v2361
    %2552 = vmatmul.bf16.gmra.mxu0 %v2094
    %v2553 = vpop.f32.mrf.mxu0
    %v2554 = vadd.f32 %v2165, %v2553
    %v2555 = vpop.f32.mrf.mxu0
    %v2556 = vadd.f32 %v2165, %v2555
    %2557 = vdwg.mxu0
    %2558 = vmatpush.bf16.msra.mxu0 %v2391
    %2559 = vmatpush.bf16.msra.mxu0 %v2389
    %2560 = vmatpush.bf16.msra.mxu0 %v2387
    %2561 = vmatpush.bf16.msra.mxu0 %v2385
    %2562 = vmatpush.bf16.msra.mxu0 %v2383
    %2563 = vmatpush.bf16.msra.mxu0 %v2381
    %2564 = vmatpush.bf16.msra.mxu0 %v2379
    %2565 = vmatpush.bf16.msra.mxu0 %v2377
    %2566 = vmatmul.bf16.gmra.mxu0 %v2095
    %v2567 = vpop.f32.mrf.mxu0
    %v2568 = vadd.f32 %v2554, %v2567
    %v2569 = vpop.f32.mrf.mxu0
    %v2570 = vadd.f32 %v2556, %v2569
    %2571 = vdwg.mxu0
    %2572 = vmatpush.bf16.msra.mxu0 %v2407
    %2573 = vmatpush.bf16.msra.mxu0 %v2405
    %2574 = vmatpush.bf16.msra.mxu0 %v2403
    %2575 = vmatpush.bf16.msra.mxu0 %v2401
    %2576 = vmatpush.bf16.msra.mxu0 %v2399
    %2577 = vmatpush.bf16.msra.mxu0 %v2397
    %2578 = vmatpush.bf16.msra.mxu0 %v2395
    %2579 = vmatpush.bf16.msra.mxu0 %v2393
    %2580 = vmatmul.bf16.gmra.mxu0 %v2096
    %v2581 = vpop.f32.mrf.mxu0
    %v2582 = vadd.f32 %v2568, %v2581
    %v2583 = vpop.f32.mrf.mxu0
    %v2584 = vadd.f32 %v2570, %v2583
    %2585 = vdwg.mxu0
    %2586 = vmatpush.bf16.msra.mxu0 %v2423
    %2587 = vmatpush.bf16.msra.mxu0 %v2421
    %2588 = vmatpush.bf16.msra.mxu0 %v2419
    %2589 = vmatpush.bf16.msra.mxu0 %v2417
    %2590 = vmatpush.bf16.msra.mxu0 %v2415
    %2591 = vmatpush.bf16.msra.mxu0 %v2413
    %2592 = vmatpush.bf16.msra.mxu0 %v2411
    %2593 = vmatpush.bf16.msra.mxu0 %v2409
    %2594 = vmatmul.bf16.gmra.mxu0 %v2097
    %v2595 = vpop.f32.mrf.mxu0
    %v2596 = vadd.f32 %v2582, %v2595
    %v2597 = vpop.f32.mrf.mxu0
    %v2598 = vadd.f32 %v2584, %v2597
    %2599 = vdwg.mxu0
    %v2600 = vmul.f32 %v2540, 0.2
    %v2601 = vmul.f32 %v2596, 0.2
    %v2602 = vmul.f32 %v2542, 0.2
    %v2603 = vmul.f32 %v2598, 0.2
    %v2604 = vmax.f32 %v2540, %v2600
    %v2605 = vmax.f32 %v2596, %v2601
    %v2606 = vmax.f32 %v2542, %v2602
    %v2607 = vmax.f32 %v2598, %v2603
    %v2608 = vld [vmem:[%s5] sm:$0x3]
    %v2609 = vld [vmem:[#allocation2] sm:$0x1]
    %2611 = vset.pattern.permute.xlu0 0
    %2612 = vperm.xlu0 %2611, %v2609
    %v2613 = vpop.permute.xlu0 %2612
    %v2615 = vperm.slane %v2613, 0
    %v2617 = vperm.slane %v2608, 0
    %v2618 = vperm.slane %v2608, 1
    %2621 = vmatpush.xpose.msra.mxu0 0.0
    %2622 = vmatpush.xpose.msra.mxu0 0.0
    %2623 = vmatpush.xpose.msra.mxu0 0.0
    %2624 = vmatpush.xpose.msra.mxu0 0.0
    %2625 = vmatpush.xpose.msra.mxu0 0.0
    %2626 = vmatpush.xpose.msra.mxu0 0.0
    %2627 = vmatpush.xpose.msra.mxu0 0.0
    %2628 = vmatpush.xpose.msra.mxu0 0.0
    %2629 = vmatpush.xpose.msra.mxu0 0.0
    %2630 = vmatpush.xpose.msra.mxu0 0.0
    %2631 = vmatpush.xpose.msra.mxu0 0.0
    %2632 = vmatpush.xpose.msra.mxu0 0.0
    %2633 = vmatpush.xpose.msra.mxu0 0.0
    %2634 = vmatpush.xpose.msra.mxu0 0.0
    %2635 = vmatpush.xpose.msra.mxu0 %v2606
    %2636 = vmatpush.xpose.msra.mxu0 %v2604
    %2637 = vmatmul.f32.gmra.mxu0 %v2617
    %v2638 = vpop.f32.mrf.mxu0
    %v2639 = vadd.f32 %v2615, %v2638
    %2640 = vdwg.mxu0
    %2641 = vmatpush.xpose.msra.mxu0 0.0
    %2642 = vmatpush.xpose.msra.mxu0 0.0
    %2643 = vmatpush.xpose.msra.mxu0 0.0
    %2644 = vmatpush.xpose.msra.mxu0 0.0
    %2645 = vmatpush.xpose.msra.mxu0 0.0
    %2646 = vmatpush.xpose.msra.mxu0 0.0
    %2647 = vmatpush.xpose.msra.mxu0 0.0
    %2648 = vmatpush.xpose.msra.mxu0 0.0
    %2649 = vmatpush.xpose.msra.mxu0 0.0
    %2650 = vmatpush.xpose.msra.mxu0 0.0
    %2651 = vmatpush.xpose.msra.mxu0 0.0
    %2652 = vmatpush.xpose.msra.mxu0 0.0
    %2653 = vmatpush.xpose.msra.mxu0 0.0
    %2654 = vmatpush.xpose.msra.mxu0 0.0
    %2655 = vmatpush.xpose.msra.mxu0 %v2607
    %2656 = vmatpush.xpose.msra.mxu0 %v2605
    %2657 = vmatmul.f32.gmra.mxu0 %v2618
    %v2658 = vpop.f32.mrf.mxu0
    %v2659 = vadd.f32 %v2639, %v2658
    %2660 = vdwg.mxu0
    %v2661 = vsub.f32 0.0, %v2659
    %v2662 = vmul.f32 %v2661, 1.442695
    %v2663 = vpow.pop %v2662
    %v2664 = vadd.f32 %v2663, 1.0
    %v2665 = vrcp.pop %v2664
    %v2666 = vmul.f32 %v2664, %v2665
    %v2667 = vsub.f32 1.0, %v2666
    %v2668 = vmul.f32 %v2665, %v2667
    %v2669 = vadd.f32 %v2665, %v2668
    %vm2670 = vweird.f32 %v2664
    %vm2671 = vweird.f32 %v2665
    %vm2672 = vmor %vm2670, %vm2671
    %v2673 = vsel %vm2672, %v2665, %v2669
    %v2674 = vand.u32 2147483647, %v2664
    %vm2675 = vcmp.eq.f32.partialorder %v2674, 8.507059e+37
    %v2676 = vand.u32 %v2664, 2147483648
    %v2677 = vor.u32 1.1754944e-38, %v2676
    %v2678 = vsel %vm2675, %v2677, %v2673
    %v2679 = vmul.f32 1.0, %v2678
    %vm2680 = vcmask 122880
    %2681 = vst.msk [vmem:[%s7] sm:$0x1] %vm2680, %v2679
    // Predicated region
    $region38: #{discriminator_forward.1} parent=1 // pred_check
      _
    $region39: #{discriminator_forward.1} parent=1 // pred_check_branch
      %2683 = sbr.rel (0) target = $region41
    $region40: #{discriminator_forward.1} parent=1 // pred_region
      _
    $region41: #{discriminator_forward.1} parent=1 // pred_fallthru
      _
    // Predicated region
    $region42: #{discriminator_forward.1} parent=1 // pred_check
      _
    $region43: #{discriminator_forward.1} parent=1 // pred_check_branch
      %2685 = sbr.rel (0) target = $region45
    $region44: #{discriminator_forward.1} parent=1 // pred_region
      _
    $region45: #{discriminator_forward.1} parent=1 // pred_fallthru
      _
    %2686 = vsyncpa [#allocation4], 1
    %2687 = vsyncpa [#allocation6], 1

</llo_original>
